<compile_context>
chip_gen: v7x
topology: tpu7x:2x2x1
jax: 0.10.0
libtpu: 0.0.40
codegen_flags: <defaults>
</compile_context>

<pallas_src>
import math
import functools

import jax
import jax.numpy as jnp
from jax import lax
from jax.experimental import pallas as pl
from jax.experimental.pallas import tpu as pltpu


def _pow2_divisor(n: int) -> int:
    """Largest power of two dividing n (alignment hint for pl.multiple_of)."""
    return (n & -n) if n > 0 else 1


def _cross_attn_kernel(y_ref, x_ref, wqT_ref, bq_ref, wkvT_ref, bkv_ref,
                       o_ref, q_scr, kv_scr,
                       *, n_head: int, d_k: int, approx_recip: bool):
    # y_ref:   (Bt, Sy, D)  query source tile
    # x_ref:   (Bt, Sx, D)  key/value source tile
    # wqT_ref: (D, D)       pre-transposed, pre-scaled (1/sqrt(d_k)) Q weight
    # bq_ref:  (1, D)       pre-scaled Q bias (f32)
    # wkvT_ref:(D, 2D)      [Wk^T | Wv^T] fused
    # bkv_ref: (1, 2D)      [bk | bv] (f32)
    # o_ref:   (Bt, Sy, D)
    # q_scr:   (Bt*Sy, D)   VMEM scratch, compute dtype
    # kv_scr:  (Bt*Sx, 2D)  VMEM scratch, compute dtype
    Bt, Sy, D = y_ref.shape
    _, Sx, _ = x_ref.shape
    cdt = q_scr.dtype                       # MXU operand dtype (bf16 by default)

    # ---- wide-M fused projections: one Q matmul + one K|V matmul per grid step ----
    # (reshape is a pure relabeling when Sy/Sx are multiples of 8 -- see module TODO)
    y2 = y_ref[...].reshape(Bt * Sy, D).astype(wqT_ref.dtype)
    x2 = x_ref[...].reshape(Bt * Sx, D).astype(wkvT_ref.dtype)

    q = jnp.dot(y2, wqT_ref[...], preferred_element_type=jnp.float32) + bq_ref[...]
    kv = jnp.dot(x2, wkvT_ref[...], preferred_element_type=jnp.float32) + bkv_ref[...]

    # Stage into VMEM scratch in compute dtype: bounds live ranges so the per-batch
    # loop below never keeps the full projection results resident in vregs.
    q_scr[...] = q.astype(cdt)
    kv_scr[...] = kv.astype(cdt)

    sy_align = _pow2_divisor(Sy)
    sx_align = _pow2_divisor(Sx)

    @pl.loop(0, Bt)                         # ref-backed loop: one batch element live at a time
    def _per_batch(b):
        qrow = pl.multiple_of(b * Sy, sy_align)
        krow = pl.multiple_of(b * Sx, sx_align)
        qb = q_scr[pl.ds(qrow, Sy), :]      # (Sy, D)   compute dtype
        kb = kv_scr[pl.ds(krow, Sx), :D]    # (Sx, D)
        vb = kv_scr[pl.ds(krow, Sx), D:]    # (Sx, D)

        head_outs = []
        for h in range(n_head):             # static unroll, small (<= 16 heads)
            lo = h * d_k
            qh = qb[:, lo:lo + d_k]         # (Sy, dk)
            kh = kb[:, lo:lo + d_k]         # (Sx, dk)
            vh = vb[:, lo:lo + d_k]         # (Sx, dk)

            # Contract the feature dim of both operands (no materialized kh.T).
            s = lax.dot_general(qh, kh,
                                dimension_numbers=(((1,), (1,)), ((), ())),
                                preferred_element_type=jnp.float32)   # (Sy, Sx)

            # Numerically-stable softmax over keys, f32 math throughout.
            s = s - jnp.max(s, axis=-1, keepdims=True)
            e = jnp.exp(s)
            inv = pl.reciprocal(jnp.sum(e, axis=-1, keepdims=True),
                                approx=approx_recip)
            p = (e * inv).astype(cdt)       # bf16 operand for the PV matmul

            head_outs.append(
                jnp.dot(p, vh, preferred_element_type=jnp.float32))   # (Sy, dk)

        # One lane-dense, aligned (Sy, D) store per batch element
        # (no per-head masked vst.msk partial stores).
        o_ref[b] = jnp.concatenate(head_outs, axis=-1).astype(o_ref.dtype)


def _vmem_budget_bytes() -> int:
    """Per-generation VMEM budget: ~3/4 of physical, capped at 100 MiB.
    -> ~48 MiB on v7x (64 MiB/TC), ~96 MiB on v5e/v6e (128 MiB)."""
    try:
        phys = int(pltpu.get_tpu_info().vmem_capacity_bytes)
    except Exception:
        phys = 64 * 1024 * 1024            # conservative fallback (v7x per-core)
    return min((phys * 3) // 4, 100 * 1024 * 1024)


def _pick_block_b(B, Sy, Sx, D, act_bytes, out_bytes, param_bytes, compute_bytes,
                  budget_bytes):
    """Largest divisor of B whose full VMEM footprint fits the budget; prefers an
    EVEN grid-step count (keeps both v7x TensorCores busy), then >= 2 steps."""

    def footprint(bt):
        act_tiles = 2 * bt * (Sy + Sx) * D * act_bytes      # y, x double-buffered
        out_tiles = 2 * bt * Sy * D * out_bytes             # out double-buffered
        weights = (3 * D * D + 3 * D) * param_bytes         # single-buffered (Buffered(1))
        scratch = bt * (Sy + 2 * Sx) * D * compute_bytes    # q_scr + kv_scr
        transient = (bt * (Sy + 2 * Sx) * D * 4             # f32 projection results
                     + (2 * Sy * Sx + Sy * D) * 4)          # one batch's attn working set
        return act_tiles + out_tiles + weights + scratch + transient

    feasible = [bt for bt in range(1, B + 1)
                if B % bt == 0 and footprint(bt) <= budget_bytes]
    if not feasible:
        return 1
    if B > 1:
        even = [bt for bt in feasible if (B // bt) % 2 == 0]
        if even:
            return max(even)
        multi = [bt for bt in feasible if (B // bt) >= 2]
        if multi:
            return max(multi)
    return max(feasible)


def cross_attention_layer(x, y, wq, bq, wk, bk, wv, bv, *, n_head: int,
                          block_b: int | None = None,
                          compute_dtype=jnp.bfloat16,
                          vmem_budget_bytes: int | None = None):
    """Pallas equivalent of CrossAttentionLayer.forward(x, y).

    x: (B, Sx, D) key/value source; y: (B, Sy, D) query source.
    w*: (D, D), b*: (D,) in PyTorch nn.Linear convention (out = in @ W^T + b).
    compute_dtype: dtype of the MXU matmul operands (default bf16; use jnp.float32
                   for exact, slow, reference-grade numerics).  Accumulation, bias
                   add and softmax math are always f32.
    """
    B, Sx, D = x.shape
    By, Sy, Dy = y.shape
    assert By == B and Dy == D
    d_k = D // n_head
    assert d_k * n_head == D

    compute_dtype = jnp.dtype(compute_dtype)
    exact = (compute_dtype == jnp.dtype(jnp.float32))

    # --- wrapper-side weight prep (constant-folded under jit) ---
    inv_sqrt_dk = 1.0 / math.sqrt(d_k)
    wqT = (wq * inv_sqrt_dk).T.astype(compute_dtype)          # fold attention scale
    bq2 = (bq * inv_sqrt_dk).reshape(1, D).astype(jnp.float32)
    wkvT = jnp.concatenate([wk.T, wv.T], axis=1).astype(compute_dtype)  # (D, 2D)
    bkv2 = jnp.concatenate([bk, bv]).reshape(1, 2 * D).astype(jnp.float32)

    if vmem_budget_bytes is None:
        vmem_budget_bytes = _vmem_budget_bytes()

    act_bytes = jnp.dtype(x.dtype).itemsize
    out_bytes = act_bytes
    param_bytes = compute_dtype.itemsize
    compute_bytes = compute_dtype.itemsize

    if block_b is None:
        block_b = _pick_block_b(B, Sy, Sx, D, act_bytes, out_bytes, param_bytes,
                                compute_bytes, vmem_budget_bytes)
    assert B % block_b == 0

    kernel = functools.partial(_cross_attn_kernel, n_head=n_head, d_k=d_k,
                               approx_recip=not exact)

    # Advisory cost estimate (projections + attention matmuls + softmax exps).
    proj_flops = 2 * B * (Sy + 2 * Sx) * D * D
    attn_flops = 4 * B * Sy * Sx * D
    cost = pl.CostEstimate(
        flops=proj_flops + attn_flops,
        transcendentals=B * n_head * Sy * Sx,
        bytes_accessed=((B * Sx * D + B * Sy * D) * act_bytes
                        + B * Sy * D * out_bytes
                        + (3 * D * D + 3 * D) * param_bytes))

    # Constant weights: index_map is (0,0) for every grid step -> single buffer.
    const_w = pl.Buffered(buffer_count=1)

    return pl.pallas_call(
        kernel,
        out_shape=jax.ShapeDtypeStruct((B, Sy, D), x.dtype),
        grid=(B // block_b,),
        in_specs=[
            pl.BlockSpec((block_b, Sy, D), lambda b: (b, 0, 0)),   # y (query src)
            pl.BlockSpec((block_b, Sx, D), lambda b: (b, 0, 0)),   # x (key/value src)
            pl.BlockSpec((D, D), lambda b: (0, 0), pipeline_mode=const_w),      # Wq^T
            pl.BlockSpec((1, D), lambda b: (0, 0), pipeline_mode=const_w),      # bq
            pl.BlockSpec((D, 2 * D), lambda b: (0, 0), pipeline_mode=const_w),  # [Wk^T|Wv^T]
            pl.BlockSpec((1, 2 * D), lambda b: (0, 0), pipeline_mode=const_w),  # [bk|bv]
        ],
        out_specs=pl.BlockSpec((block_b, Sy, D), lambda b: (b, 0, 0)),
        scratch_shapes=[
            pltpu.VMEM((block_b * Sy, D), compute_dtype),          # staged q
            pltpu.VMEM((block_b * Sx, 2 * D), compute_dtype),      # staged k|v
        ],
        compiler_params=pltpu.CompilerParams(
            dimension_semantics=("parallel",),
            vmem_limit_bytes=vmem_budget_bytes),
        cost_estimate=cost,
    )(y, x, wqT, bq2, wkvT, bkv2)


def _reference(x, y, wq, bq, wk, bk, wv, bv, n_head):
    """Pure-JAX transcription of the PyTorch forward, for verification."""
    B, Sx, D = x.shape
    _, Sy, _ = y.shape
    d_k = D // n_head

    def lin(v, w, b):
        return v @ w.T + b

    q = lin(y, wq, bq).reshape(B, Sy, n_head, d_k).transpose(0, 2, 1, 3)
    k = lin(x, wk, bk).reshape(B, Sx, n_head, d_k).transpose(0, 2, 1, 3)
    v = lin(x, wv, bv).reshape(B, Sx, n_head, d_k).transpose(0, 2, 1, 3)
    scores = jnp.einsum("bhqd,bhkd->bhqk", q, k) / math.sqrt(d_k)
    p = jax.nn.softmax(scores, axis=-1)
    out = jnp.einsum("bhqk,bhkd->bhqd", p, v)
    return out.transpose(0, 2, 1, 3).reshape(B, Sy, D)


if __name__ == "__main__":
    # Small shapes consistent with the module's forward (Sy multiple of 8 so the
    # batch-flatten reshape is a pure relabeling).
    B, Sx, Sy, D, H = 4, 16, 8, 32, 4

    key = jax.random.PRNGKey(0)
    kx, ky, k1, k2, k3, k4, k5, k6 = jax.random.split(key, 8)

    x = jax.random.normal(kx, (B, Sx, D), dtype=jnp.float32)
    y = jax.random.normal(ky, (B, Sy, D), dtype=jnp.float32)

    # Deterministic nn.Linear-like init: uniform(-1/sqrt(D), 1/sqrt(D)).
    bound = 1.0 / math.sqrt(D)
    wq = jax.random.uniform(k1, (D, D), jnp.float32, -bound, bound)
    wk = jax.random.uniform(k2, (D, D), jnp.float32, -bound, bound)
    wv = jax.random.uniform(k3, (D, D), jnp.float32, -bound, bound)
    bq = jax.random.uniform(k4, (D,), jnp.float32, -bound, bound)
    bk = jax.random.uniform(k5, (D,), jnp.float32, -bound, bound)
    bv = jax.random.uniform(k6, (D,), jnp.float32, -bound, bound)

    ref = _reference(x, y, wq, bq, wk, bk, wv, bv, H)

    # Exact path: f32 MXU operands, exact reciprocal -> tight tolerance.
    f32_fn = jax.jit(functools.partial(cross_attention_layer, n_head=H,
                                       compute_dtype=jnp.float32))
    out_f32 = jax.block_until_ready(f32_fn(x, y, wq, bq, wk, bk, wv, bv))
    assert out_f32.shape == (B, Sy, D), out_f32.shape
    assert jnp.allclose(out_f32, ref, atol=1e-5, rtol=1e-5), "f32 path mismatch"

    # Default fast path: bf16 MXU operands + approx reciprocal -> loose tolerance.
    bf16_fn = jax.jit(functools.partial(cross_attention_layer, n_head=H))
    out_bf16 = jax.block_until_ready(bf16_fn(x, y, wq, bq, wk, bk, wv, bv))
    assert out_bf16.shape == (B, Sy, D), out_bf16.shape
    assert jnp.allclose(out_bf16, ref, atol=3e-2, rtol=3e-2), "bf16 path mismatch"

    print("KERNEL_OK")
</pallas_src>

<mosaic_0001>
module attributes {stable_mosaic.version = 11 : i64} {
  func.func @_cross_attn_kernel(%arg0: i32, %arg1: memref<2x8x32xf32, #tpu.memory_space<vmem>>, %arg2: memref<2x16x32xf32, #tpu.memory_space<vmem>>, %arg3: memref<32x32xf32, #tpu.memory_space<vmem>>, %arg4: memref<1x32xf32, #tpu.memory_space<vmem>>, %arg5: memref<32x64xf32, #tpu.memory_space<vmem>>, %arg6: memref<1x64xf32, #tpu.memory_space<vmem>>, %arg7: memref<2x8x32xf32, #tpu.memory_space<vmem>>, %arg8: memref<16x32xf32, #tpu.memory_space<vmem>>, %arg9: memref<32x64xf32, #tpu.memory_space<vmem>>) attributes {dimension_semantics = [#tpu.dimension_semantics<parallel>], iteration_bounds = array<i64: 2>, scalar_prefetch = 0 : i64, scratch_operands = 2 : i64, tpu.core_type = #tpu.core_type<tc>, window_params = [{transform_indices = @transform_0, window_bounds = array<i64: 2, 8, 32>}, {transform_indices = @transform_1, window_bounds = array<i64: 2, 16, 32>}, {pipeline_mode = #tpu.pipeline_mode<synchronous>, transform_indices = @transform_2, window_bounds = array<i64: 32, 32>}, {pipeline_mode = #tpu.pipeline_mode<synchronous>, transform_indices = @transform_3, window_bounds = array<i64: 1, 32>}, {pipeline_mode = #tpu.pipeline_mode<synchronous>, transform_indices = @transform_4, window_bounds = array<i64: 32, 64>}, {pipeline_mode = #tpu.pipeline_mode<synchronous>, transform_indices = @transform_5, window_bounds = array<i64: 1, 64>}, {transform_indices = @transform_6, window_bounds = array<i64: 2, 8, 32>}]} {
    %c0 = arith.constant 0 : index
    %c0_0 = arith.constant 0 : index
    %c0_1 = arith.constant 0 : index
    %0 = vector.load %arg1[%c0, %c0_0, %c0_1] : memref<2x8x32xf32, #tpu.memory_space<vmem>>, vector<2x8x32xf32>
    %1 = vector.shape_cast %0 : vector<2x8x32xf32> to vector<16x32xf32>
    %c0_2 = arith.constant 0 : index
    %c0_3 = arith.constant 0 : index
    %c0_4 = arith.constant 0 : index
    %2 = vector.load %arg2[%c0_2, %c0_3, %c0_4] : memref<2x16x32xf32, #tpu.memory_space<vmem>>, vector<2x16x32xf32>
    %3 = vector.shape_cast %2 : vector<2x16x32xf32> to vector<32x32xf32>
    %c0_5 = arith.constant 0 : index
    %c0_6 = arith.constant 0 : index
    %4 = vector.load %arg3[%c0_5, %c0_6] : memref<32x32xf32, #tpu.memory_space<vmem>>, vector<32x32xf32>
    %cst = arith.constant dense<0.000000e+00> : vector<16x32xf32>
    %5 = tpu.matmul %1, %4, %cst {dimension_numbers = #tpu.dot_dimension_numbers<[1], [0], [0], [1], [0, 0, 1, 1], [], []>} : vector<16x32xf32>, vector<32x32xf32>, vector<16x32xf32> -> vector<16x32xf32>
    %c0_7 = arith.constant 0 : index
    %c0_8 = arith.constant 0 : index
    %6 = vector.load %arg4[%c0_7, %c0_8] : memref<1x32xf32, #tpu.memory_space<vmem>>, vector<1x32xf32>
    %7 = vector.broadcast %6 : vector<1x32xf32> to vector<16x32xf32>
    %8 = arith.addf %5, %7 : vector<16x32xf32>
    %c0_9 = arith.constant 0 : index
    %c0_10 = arith.constant 0 : index
    %9 = vector.load %arg5[%c0_9, %c0_10] : memref<32x64xf32, #tpu.memory_space<vmem>>, vector<32x64xf32>
    %cst_11 = arith.constant dense<0.000000e+00> : vector<32x64xf32>
    %10 = tpu.matmul %3, %9, %cst_11 {dimension_numbers = #tpu.dot_dimension_numbers<[1], [0], [0], [1], [0, 0, 1, 1], [], []>} : vector<32x32xf32>, vector<32x64xf32>, vector<32x64xf32> -> vector<32x64xf32>
    %c0_12 = arith.constant 0 : index
    %c0_13 = arith.constant 0 : index
    %11 = vector.load %arg6[%c0_12, %c0_13] : memref<1x64xf32, #tpu.memory_space<vmem>>, vector<1x64xf32>
    %12 = vector.broadcast %11 : vector<1x64xf32> to vector<32x64xf32>
    %13 = arith.addf %10, %12 : vector<32x64xf32>
    %c0_14 = arith.constant 0 : index
    %c0_15 = arith.constant 0 : index
    %14 = vector.load %arg8[%c0_14, %c0_15] : memref<16x32xf32, #tpu.memory_space<vmem>>, vector<16x32xf32>
    tpu.vector_store %arg8[%c0_14, %c0_15], %8 {strides = array<i32>} : memref<16x32xf32, #tpu.memory_space<vmem>>, vector<16x32xf32>,
    %c0_16 = arith.constant 0 : index
    %c0_17 = arith.constant 0 : index
    %15 = vector.load %arg9[%c0_16, %c0_17] : memref<32x64xf32, #tpu.memory_space<vmem>>, vector<32x64xf32>
    tpu.vector_store %arg9[%c0_16, %c0_17], %13 {strides = array<i32>} : memref<32x64xf32, #tpu.memory_space<vmem>>, vector<32x64xf32>,
    %c0_i32 = arith.constant 0 : i32
    %c2_i32 = arith.constant 2 : i32
    %16 = arith.addi %c0_i32, %c2_i32 : i32
    %c1_i32 = arith.constant 1 : i32
    scf.for %arg10 = %c0_i32 to %16 step %c1_i32  : i32 {
      %c1_i32_19 = arith.constant 1 : i32
      %17 = arith.muli %arg10, %c1_i32_19 : i32
      %c0_i32_20 = arith.constant 0 : i32
      %18 = arith.addi %c0_i32_20, %17 : i32
      %c8_i32 = arith.constant 8 : i32
      %19 = arith.muli %18, %c8_i32 : i32
      %20 = tpu.assume_multiple %19, 8 : i32
      %c16_i32 = arith.constant 16 : i32
      %21 = arith.muli %18, %c16_i32 : i32
      %22 = tpu.assume_multiple %21, 16 : i32
      %23 = arith.index_cast %20 : i32 to index
      %c0_21 = arith.constant 0 : index
      %24 = vector.load %arg8[%23, %c0_21] : memref<16x32xf32, #tpu.memory_space<vmem>>, vector<8x32xf32>
      %25 = arith.index_cast %22 : i32 to index
      %c0_22 = arith.constant 0 : index
      %26 = vector.load %arg9[%25, %c0_22] : memref<32x64xf32, #tpu.memory_space<vmem>>, vector<16x32xf32>
      %27 = arith.index_cast %22 : i32 to index
      %c32 = arith.constant 32 : index
      %28 = vector.load %arg9[%27, %c32] : memref<32x64xf32, #tpu.memory_space<vmem>>, vector<16x32xf32>
      %29 = vector.extract_strided_slice %24 {offsets = [0, 0], sizes = [8, 8], strides = [1, 1]} : vector<8x32xf32> to vector<8x8xf32>
      %30 = vector.extract_strided_slice %26 {offsets = [0, 0], sizes = [16, 8], strides = [1, 1]} : vector<16x32xf32> to vector<16x8xf32>
      %31 = vector.extract_strided_slice %28 {offsets = [0, 0], sizes = [16, 8], strides = [1, 1]} : vector<16x32xf32> to vector<16x8xf32>
      %cst_23 = arith.constant dense<0.000000e+00> : vector<8x16xf32>
      %32 = tpu.matmul %29, %30, %cst_23 {dimension_numbers = #tpu.dot_dimension_numbers<[1], [1], [0], [0], [0, 0, 1, 0], [], []>} : vector<8x8xf32>, vector<16x8xf32>, vector<8x16xf32> -> vector<8x16xf32>
      %cst_24 = arith.constant dense<0xFF800000> : vector<8xf32>
      %33 = vector.multi_reduction <maximumf>, %32, %cst_24 [1] : vector<8x16xf32> to vector<8xf32>
      %34 = vector.shape_cast %33 : vector<8xf32> to vector<8x1xf32>
      %35 = vector.broadcast %34 : vector<8x1xf32> to vector<8x16xf32>
      %36 = arith.subf %32, %35 : vector<8x16xf32>
      %37 = math.exp %36 : vector<8x16xf32>
      %cst_25 = arith.constant dense<0.000000e+00> : vector<8xf32>
      %38 = vector.multi_reduction <add>, %37, %cst_25 [1] : vector<8x16xf32> to vector<8xf32>
      %39 = vector.shape_cast %38 : vector<8xf32> to vector<8x1xf32>
      %40 = tpu.reciprocal %39 : vector<8x1xf32> -> vector<8x1xf32>
      %41 = vector.broadcast %40 : vector<8x1xf32> to vector<8x16xf32>
      %42 = arith.mulf %37, %41 : vector<8x16xf32>
      %cst_26 = arith.constant dense<0.000000e+00> : vector<8x8xf32>
      %43 = tpu.matmul %42, %31, %cst_26 {dimension_numbers = #tpu.dot_dimension_numbers<[1], [0], [0], [1], [0, 0, 1, 1], [], []>} : vector<8x16xf32>, vector<16x8xf32>, vector<8x8xf32> -> vector<8x8xf32>
      %44 = vector.extract_strided_slice %24 {offsets = [0, 8], sizes = [8, 8], strides = [1, 1]} : vector<8x32xf32> to vector<8x8xf32>
      %45 = vector.extract_strided_slice %26 {offsets = [0, 8], sizes = [16, 8], strides = [1, 1]} : vector<16x32xf32> to vector<16x8xf32>
      %46 = vector.extract_strided_slice %28 {offsets = [0, 8], sizes = [16, 8], strides = [1, 1]} : vector<16x32xf32> to vector<16x8xf32>
      %cst_27 = arith.constant dense<0.000000e+00> : vector<8x16xf32>
      %47 = tpu.matmul %44, %45, %cst_27 {dimension_numbers = #tpu.dot_dimension_numbers<[1], [1], [0], [0], [0, 0, 1, 0], [], []>} : vector<8x8xf32>, vector<16x8xf32>, vector<8x16xf32> -> vector<8x16xf32>
      %cst_28 = arith.constant dense<0xFF800000> : vector<8xf32>
      %48 = vector.multi_reduction <maximumf>, %47, %cst_28 [1] : vector<8x16xf32> to vector<8xf32>
      %49 = vector.shape_cast %48 : vector<8xf32> to vector<8x1xf32>
      %50 = vector.broadcast %49 : vector<8x1xf32> to vector<8x16xf32>
      %51 = arith.subf %47, %50 : vector<8x16xf32>
      %52 = math.exp %51 : vector<8x16xf32>
      %cst_29 = arith.constant dense<0.000000e+00> : vector<8xf32>
      %53 = vector.multi_reduction <add>, %52, %cst_29 [1] : vector<8x16xf32> to vector<8xf32>
      %54 = vector.shape_cast %53 : vector<8xf32> to vector<8x1xf32>
      %55 = tpu.reciprocal %54 : vector<8x1xf32> -> vector<8x1xf32>
      %56 = vector.broadcast %55 : vector<8x1xf32> to vector<8x16xf32>
      %57 = arith.mulf %52, %56 : vector<8x16xf32>
      %cst_30 = arith.constant dense<0.000000e+00> : vector<8x8xf32>
      %58 = tpu.matmul %57, %46, %cst_30 {dimension_numbers = #tpu.dot_dimension_numbers<[1], [0], [0], [1], [0, 0, 1, 1], [], []>} : vector<8x16xf32>, vector<16x8xf32>, vector<8x8xf32> -> vector<8x8xf32>
      %59 = vector.extract_strided_slice %24 {offsets = [0, 16], sizes = [8, 8], strides = [1, 1]} : vector<8x32xf32> to vector<8x8xf32>
      %60 = vector.extract_strided_slice %26 {offsets = [0, 16], sizes = [16, 8], strides = [1, 1]} : vector<16x32xf32> to vector<16x8xf32>
      %61 = vector.extract_strided_slice %28 {offsets = [0, 16], sizes = [16, 8], strides = [1, 1]} : vector<16x32xf32> to vector<16x8xf32>
      %cst_31 = arith.constant dense<0.000000e+00> : vector<8x16xf32>
      %62 = tpu.matmul %59, %60, %cst_31 {dimension_numbers = #tpu.dot_dimension_numbers<[1], [1], [0], [0], [0, 0, 1, 0], [], []>} : vector<8x8xf32>, vector<16x8xf32>, vector<8x16xf32> -> vector<8x16xf32>
      %cst_32 = arith.constant dense<0xFF800000> : vector<8xf32>
      %63 = vector.multi_reduction <maximumf>, %62, %cst_32 [1] : vector<8x16xf32> to vector<8xf32>
      %64 = vector.shape_cast %63 : vector<8xf32> to vector<8x1xf32>
      %65 = vector.broadcast %64 : vector<8x1xf32> to vector<8x16xf32>
      %66 = arith.subf %62, %65 : vector<8x16xf32>
      %67 = math.exp %66 : vector<8x16xf32>
      %cst_33 = arith.constant dense<0.000000e+00> : vector<8xf32>
      %68 = vector.multi_reduction <add>, %67, %cst_33 [1] : vector<8x16xf32> to vector<8xf32>
      %69 = vector.shape_cast %68 : vector<8xf32> to vector<8x1xf32>
      %70 = tpu.reciprocal %69 : vector<8x1xf32> -> vector<8x1xf32>
      %71 = vector.broadcast %70 : vector<8x1xf32> to vector<8x16xf32>
      %72 = arith.mulf %67, %71 : vector<8x16xf32>
      %cst_34 = arith.constant dense<0.000000e+00> : vector<8x8xf32>
      %73 = tpu.matmul %72, %61, %cst_34 {dimension_numbers = #tpu.dot_dimension_numbers<[1], [0], [0], [1], [0, 0, 1, 1], [], []>} : vector<8x16xf32>, vector<16x8xf32>, vector<8x8xf32> -> vector<8x8xf32>
      %74 = vector.extract_strided_slice %24 {offsets = [0, 24], sizes = [8, 8], strides = [1, 1]} : vector<8x32xf32> to vector<8x8xf32>
      %75 = vector.extract_strided_slice %26 {offsets = [0, 24], sizes = [16, 8], strides = [1, 1]} : vector<16x32xf32> to vector<16x8xf32>
      %76 = vector.extract_strided_slice %28 {offsets = [0, 24], sizes = [16, 8], strides = [1, 1]} : vector<16x32xf32> to vector<16x8xf32>
      %cst_35 = arith.constant dense<0.000000e+00> : vector<8x16xf32>
      %77 = tpu.matmul %74, %75, %cst_35 {dimension_numbers = #tpu.dot_dimension_numbers<[1], [1], [0], [0], [0, 0, 1, 0], [], []>} : vector<8x8xf32>, vector<16x8xf32>, vector<8x16xf32> -> vector<8x16xf32>
      %cst_36 = arith.constant dense<0xFF800000> : vector<8xf32>
      %78 = vector.multi_reduction <maximumf>, %77, %cst_36 [1] : vector<8x16xf32> to vector<8xf32>
      %79 = vector.shape_cast %78 : vector<8xf32> to vector<8x1xf32>
      %80 = vector.broadcast %79 : vector<8x1xf32> to vector<8x16xf32>
      %81 = arith.subf %77, %80 : vector<8x16xf32>
      %82 = math.exp %81 : vector<8x16xf32>
      %cst_37 = arith.constant dense<0.000000e+00> : vector<8xf32>
      %83 = vector.multi_reduction <add>, %82, %cst_37 [1] : vector<8x16xf32> to vector<8xf32>
      %84 = vector.shape_cast %83 : vector<8xf32> to vector<8x1xf32>
      %85 = tpu.reciprocal %84 : vector<8x1xf32> -> vector<8x1xf32>
      %86 = vector.broadcast %85 : vector<8x1xf32> to vector<8x16xf32>
      %87 = arith.mulf %82, %86 : vector<8x16xf32>
      %cst_38 = arith.constant dense<0.000000e+00> : vector<8x8xf32>
      %88 = tpu.matmul %87, %76, %cst_38 {dimension_numbers = #tpu.dot_dimension_numbers<[1], [0], [0], [1], [0, 0, 1, 1], [], []>} : vector<8x16xf32>, vector<16x8xf32>, vector<8x8xf32> -> vector<8x8xf32>
      %89 = tpu.concatenate %43, %58, %73, %88 in 1 : vector<8x8xf32>, vector<8x8xf32>, vector<8x8xf32>, vector<8x8xf32> -> vector<8x32xf32>
      %90 = arith.index_cast %18 : i32 to index
      %c0_39 = arith.constant 0 : index
      %c0_40 = arith.constant 0 : index
      %91 = vector.load %arg7[%90, %c0_39, %c0_40] : memref<2x8x32xf32, #tpu.memory_space<vmem>>, vector<1x8x32xf32>
      %92 = vector.shape_cast %91 : vector<1x8x32xf32> to vector<8x32xf32>
      %93 = vector.shape_cast %89 : vector<8x32xf32> to vector<1x8x32xf32>
      tpu.vector_store %arg7[%90, %c0_39, %c0_40], %93 {strides = array<i32>} : memref<2x8x32xf32, #tpu.memory_space<vmem>>, vector<1x8x32xf32>,
    }
    %c2_i32_18 = arith.constant 2 : i32
    return
  }
  func.func @transform_0(%arg0: i32) -> (i32, i32, i32) {
    %c0_i32 = arith.constant 0 : i32
    %c0_i32_0 = arith.constant 0 : i32
    %c0_i32_1 = arith.constant 0 : i32
    return %arg0, %c0_i32, %c0_i32_0 : i32, i32, i32
  }
  func.func @transform_1(%arg0: i32) -> (i32, i32, i32) {
    %c0_i32 = arith.constant 0 : i32
    %c0_i32_0 = arith.constant 0 : i32
    %c0_i32_1 = arith.constant 0 : i32
    return %arg0, %c0_i32, %c0_i32_0 : i32, i32, i32
  }
  func.func @transform_2(%arg0: i32) -> (i32, i32) {
    %c0_i32 = arith.constant 0 : i32
    %c0_i32_0 = arith.constant 0 : i32
    %c0_i32_1 = arith.constant 0 : i32
    return %c0_i32, %c0_i32_0 : i32, i32
  }
  func.func @transform_3(%arg0: i32) -> (i32, i32) {
    %c0_i32 = arith.constant 0 : i32
    %c0_i32_0 = arith.constant 0 : i32
    %c0_i32_1 = arith.constant 0 : i32
    return %c0_i32, %c0_i32_0 : i32, i32
  }
  func.func @transform_4(%arg0: i32) -> (i32, i32) {
    %c0_i32 = arith.constant 0 : i32
    %c0_i32_0 = arith.constant 0 : i32
    %c0_i32_1 = arith.constant 0 : i32
    return %c0_i32, %c0_i32_0 : i32, i32
  }
  func.func @transform_5(%arg0: i32) -> (i32, i32) {
    %c0_i32 = arith.constant 0 : i32
    %c0_i32_0 = arith.constant 0 : i32
    %c0_i32_1 = arith.constant 0 : i32
    return %c0_i32, %c0_i32_0 : i32, i32
  }
  func.func @transform_6(%arg0: i32) -> (i32, i32, i32) {
    %c0_i32 = arith.constant 0 : i32
    %c0_i32_0 = arith.constant 0 : i32
    %c0_i32_1 = arith.constant 0 : i32
    return %arg0, %c0_i32, %c0_i32_0 : i32, i32, i32
  }
}

</mosaic_0001>

<llo_original>
// kernel: cross_attention_layer.1
$region0: #{cross_attention_layer.1}
  #allocation0 [shape = 'u32[]', space=smem, size = 0x4, offset = 0x4, fixed_abs, tag = 'smem constant byte address 0x4 - core index']
  #allocation1 [shape = 'u32[144,128]{1,0:T(1,128)}', space=vmem, size = 0x12000, scoped, tag = 'internal scratch']
  #allocation2 [shape = 'f32[16,32]{1,0:T(8,128)}', space=vmem, size = 0x2000, scoped, tag = 'scratch operand']
  #allocation3 [shape = 'f32[32,64]{1,0:T(8,128)}', space=vmem, size = 0x4000, scoped, tag = 'scratch operand']
  %s0 = inlined_call_operand.vmem [shape: f32[4,8,32], index: 0, kind: input, shape index: {}]
  %s1 = inlined_call_operand.vmem [shape: f32[4,16,32], index: 1, kind: input, shape index: {}]
  %s2 = inlined_call_operand.vmem [shape: f32[32,32], index: 2, kind: input, shape index: {}]
  %s3 = inlined_call_operand.vmem [shape: f32[1,32], index: 3, kind: input, shape index: {}]
  %s4 = inlined_call_operand.vmem [shape: f32[32,64], index: 4, kind: input, shape index: {}]
  %s5 = inlined_call_operand.vmem [shape: f32[1,64], index: 5, kind: input, shape index: {}]
  %s6 = inlined_call_operand.hbm [shape: f32[4,8,32], index: 6, kind: output, shape index: {}]
  %s7 = sld [smem:[#allocation0]]
  $region64: #{cross_attention_layer.1} parent=0
    _
  %s9 = ssub.s32 1, %s7
  %s10 = scalar_select 0, %s9, %s7
  $region1: #{cross_attention_layer.1} parent=0
    #allocation4 [shape = 'u8[16384]{0}', space=vmem, size = 0x4000, scoped, tag = 'output window, operand 0']
    #allocation5 [shape = 's32[2]{0}', space=sflag, size = 0x8, scoped, tag = 'scoped memory for cross_attention_layer.1']
    %11 = vsyncpa [#allocation5], 0
    %s12 = scalar_lea.sflag [#allocation5], 1
    %13 = vsyncpa %s12, 0
    loop: start=0, step=1, limit=4
    $region2: #{cross_attention_layer.1} parent=1 // loop_pre_header
      _
    $region3: #{cross_attention_layer.1} parent=1 // loop_header
      %s15 = sphi 0, %s19
      %p16 = scmp.ge.s32.totalorder %s15, 4
      %s25 = sphi 0, %s27
      %s28 = sphi 0, %s25
      %s29 = sphi 0, %s28
      %s45 = sphi 0, %s29
      %s51 = sphi 0, %s53
      %s54 = sphi 0, %s51
      %s55 = sphi 0, %s54
      %s71 = sphi 0, %s55
      %s75 = sphi 0, %s75
      %s77 = sphi 0, %s75
      %s78 = sphi 0, %s77
      %s92 = sphi 0, %s78
      %s96 = sphi 0, %s96
      %s98 = sphi 0, %s96
      %s99 = sphi 0, %s98
      %s113 = sphi 0, %s99
      %s117 = sphi 0, %s117
      %s119 = sphi 0, %s117
      %s120 = sphi 0, %s119
      %s134 = sphi 0, %s120
      %s138 = sphi 0, %s138
      %s140 = sphi 0, %s138
      %s141 = sphi 0, %s140
      %s155 = sphi 0, %s141
      %s161 = sphi 0, %s163
      %s164 = sphi 0, %s161
      %s165 = sphi 0, %s164
      %s181 = sphi 0, %s165
    $region4: #{cross_attention_layer.1} parent=1 // loop_header_branch
      %18 = sbr.rel (%p16) target = $region8
    $region5: #{cross_attention_layer.1} parent=1 // loop_body
      %s20 = ssub.s32 %s15, 1
      %s21 = ssub.s32 %s15, 2
      %s22 = sadd.s32 %s15, 1
      %s23 = ssub.s32 %s15, %s22
      %p24 = scmp.eq.s32.totalorder %s23, 0
      %s26 = sadd.s32 %s25, 1
      %s27 = scalar_select %p24, %s25, %s26
      %p30 = pneg %p24
      %p31 = scmp.eq.s32.totalorder %s15, 1
      %p32 = por %p30, %p31
      %p33 = scmp.ne.s32.totalorder %s25, %s28
      %p34 = scmp.eq.s32.totalorder %s15, 0
      %p35 = por %p33, %p34
      %p36 = scmp.ne.s32.totalorder %s25, %s28
      %p37 = scmp.eq.s32.totalorder %s20, 1
      %p38 = por %p36, %p37
      %p39 = scmp.ne.s32.totalorder %s28, %s29
      %p40 = scmp.eq.s32.totalorder %s20, 0
      %p41 = por %p39, %p40
      %p42 = scmp.ne.s32.totalorder %s28, %s29
      %p43 = scmp.eq.s32.totalorder %s21, 1
      %p44 = por %p42, %p43
      %p46 = scmp.ne.s32.totalorder %s29, %s45
      %p47 = scmp.eq.s32.totalorder %s21, 0
      %p48 = por %p46, %p47
      %s49 = ssub.s32 %s15, %s22
      %p50 = scmp.eq.s32.totalorder %s49, 0
      %s52 = sadd.s32 %s51, 1
      %s53 = scalar_select %p50, %s51, %s52
      %p56 = pneg %p50
      %p57 = scmp.eq.s32.totalorder %s15, 1
      %p58 = por %p56, %p57
      %p59 = scmp.ne.s32.totalorder %s51, %s54
      %p60 = scmp.eq.s32.totalorder %s15, 0
      %p61 = por %p59, %p60
      %p62 = scmp.ne.s32.totalorder %s51, %s54
      %p63 = scmp.eq.s32.totalorder %s20, 1
      %p64 = por %p62, %p63
      %p65 = scmp.ne.s32.totalorder %s54, %s55
      %p66 = scmp.eq.s32.totalorder %s20, 0
      %p67 = por %p65, %p66
      %p68 = scmp.ne.s32.totalorder %s54, %s55
      %p69 = scmp.eq.s32.totalorder %s21, 1
      %p70 = por %p68, %p69
      %p72 = scmp.ne.s32.totalorder %s55, %s71
      %p73 = scmp.eq.s32.totalorder %s21, 0
      %p74 = por %p72, %p73
      %s76 = sadd.s32 %s75, 1
      %p79 = scmp.eq.s32.totalorder %s15, 1
      %p80 = scmp.ne.s32.totalorder %s75, %s77
      %p81 = scmp.eq.s32.totalorder %s15, 0
      %p82 = por %p80, %p81
      %p83 = scmp.ne.s32.totalorder %s75, %s77
      %p84 = scmp.eq.s32.totalorder %s20, 1
      %p85 = por %p83, %p84
      %p86 = scmp.ne.s32.totalorder %s77, %s78
      %p87 = scmp.eq.s32.totalorder %s20, 0
      %p88 = por %p86, %p87
      %p89 = scmp.ne.s32.totalorder %s77, %s78
      %p90 = scmp.eq.s32.totalorder %s21, 1
      %p91 = por %p89, %p90
      %p93 = scmp.ne.s32.totalorder %s78, %s92
      %p94 = scmp.eq.s32.totalorder %s21, 0
      %p95 = por %p93, %p94
      %s97 = sadd.s32 %s96, 1
      %p100 = scmp.eq.s32.totalorder %s15, 1
      %p101 = scmp.ne.s32.totalorder %s96, %s98
      %p102 = scmp.eq.s32.totalorder %s15, 0
      %p103 = por %p101, %p102
      %p104 = scmp.ne.s32.totalorder %s96, %s98
      %p105 = scmp.eq.s32.totalorder %s20, 1
      %p106 = por %p104, %p105
      %p107 = scmp.ne.s32.totalorder %s98, %s99
      %p108 = scmp.eq.s32.totalorder %s20, 0
      %p109 = por %p107, %p108
      %p110 = scmp.ne.s32.totalorder %s98, %s99
      %p111 = scmp.eq.s32.totalorder %s21, 1
      %p112 = por %p110, %p111
      %p114 = scmp.ne.s32.totalorder %s99, %s113
      %p115 = scmp.eq.s32.totalorder %s21, 0
      %p116 = por %p114, %p115
      %s118 = sadd.s32 %s117, 1
      %p121 = scmp.eq.s32.totalorder %s15, 1
      %p122 = scmp.ne.s32.totalorder %s117, %s119
      %p123 = scmp.eq.s32.totalorder %s15, 0
      %p124 = por %p122, %p123
      %p125 = scmp.ne.s32.totalorder %s117, %s119
      %p126 = scmp.eq.s32.totalorder %s20, 1
      %p127 = por %p125, %p126
      %p128 = scmp.ne.s32.totalorder %s119, %s120
      %p129 = scmp.eq.s32.totalorder %s20, 0
      %p130 = por %p128, %p129
      %p131 = scmp.ne.s32.totalorder %s119, %s120
      %p132 = scmp.eq.s32.totalorder %s21, 1
      %p133 = por %p131, %p132
      %p135 = scmp.ne.s32.totalorder %s120, %s134
      %p136 = scmp.eq.s32.totalorder %s21, 0
      %p137 = por %p135, %p136
      %s139 = sadd.s32 %s138, 1
      %p142 = scmp.eq.s32.totalorder %s15, 1
      %p143 = scmp.ne.s32.totalorder %s138, %s140
      %p144 = scmp.eq.s32.totalorder %s15, 0
      %p145 = por %p143, %p144
      %p146 = scmp.ne.s32.totalorder %s138, %s140
      %p147 = scmp.eq.s32.totalorder %s20, 1
      %p148 = por %p146, %p147
      %p149 = scmp.ne.s32.totalorder %s140, %s141
      %p150 = scmp.eq.s32.totalorder %s20, 0
      %p151 = por %p149, %p150
      %p152 = scmp.ne.s32.totalorder %s140, %s141
      %p153 = scmp.eq.s32.totalorder %s21, 1
      %p154 = por %p152, %p153
      %p156 = scmp.ne.s32.totalorder %s141, %s155
      %p157 = scmp.eq.s32.totalorder %s21, 0
      %p158 = por %p156, %p157
      %s159 = ssub.s32 %s15, %s22
      %p160 = scmp.eq.s32.totalorder %s159, 0
      %s162 = sadd.s32 %s161, 1
      %s163 = scalar_select %p160, %s161, %s162
      %p166 = pneg %p160
      %p167 = scmp.eq.s32.totalorder %s15, 1
      %p168 = por %p166, %p167
      %p169 = scmp.ne.s32.totalorder %s161, %s164
      %p170 = scmp.eq.s32.totalorder %s15, 0
      %p171 = por %p169, %p170
      %p172 = scmp.ne.s32.totalorder %s161, %s164
      %p173 = scmp.eq.s32.totalorder %s20, 1
      %p174 = por %p172, %p173
      %p175 = scmp.ne.s32.totalorder %s164, %s165
      %p176 = scmp.eq.s32.totalorder %s20, 0
      %p177 = por %p175, %p176
      %p178 = scmp.ne.s32.totalorder %s164, %s165
      %p179 = scmp.eq.s32.totalorder %s21, 1
      %p180 = por %p178, %p179
      %p182 = scmp.ne.s32.totalorder %s165, %s181
      %p183 = scmp.eq.s32.totalorder %s21, 0
      %p184 = por %p182, %p183
      %p185 = scmp.le.s32.totalorder 1, %s15
      %p186 = scmp.lt.s32.totalorder %s15, 3
      %p187 = pnand %p185, %p186
      %p188 = pneg %p187
      // Predicated region
      $region9: #{cross_attention_layer.1} parent=5 // pred_check
        _
      $region10: #{cross_attention_layer.1} parent=5 // pred_check_branch
        %190 = sbr.rel (%p187) target = $region12
      $region11: #{cross_attention_layer.1} parent=5 // pred_region
        %s191 = ssub.s32 %s15, 1
        // Predicated region
        $region13: #{cross_attention_layer.1} parent=11 // pred_check
          %p192 = pneg %p88
        $region14: #{cross_attention_layer.1} parent=11 // pred_check_branch
          %194 = sbr.rel (%p192) target = $region16
        $region15: #{cross_attention_layer.1} parent=11 // pred_region
          _
        $region16: #{cross_attention_layer.1} parent=11 // pred_fallthru
          _
        // Predicated region
        $region17: #{cross_attention_layer.1} parent=11 // pred_check
          %p195 = pneg %p109
        $region18: #{cross_attention_layer.1} parent=11 // pred_check_branch
          %197 = sbr.rel (%p195) target = $region20
        $region19: #{cross_attention_layer.1} parent=11 // pred_region
          _
        $region20: #{cross_attention_layer.1} parent=11 // pred_fallthru
          _
        // Predicated region
        $region21: #{cross_attention_layer.1} parent=11 // pred_check
          %p198 = pneg %p130
        $region22: #{cross_attention_layer.1} parent=11 // pred_check_branch
          %200 = sbr.rel (%p198) target = $region24
        $region23: #{cross_attention_layer.1} parent=11 // pred_region
          _
        $region24: #{cross_attention_layer.1} parent=11 // pred_fallthru
          _
        // Predicated region
        $region25: #{cross_attention_layer.1} parent=11 // pred_check
          %p201 = pneg %p151
        $region26: #{cross_attention_layer.1} parent=11 // pred_check_branch
          %203 = sbr.rel (%p201) target = $region28
        $region27: #{cross_attention_layer.1} parent=11 // pred_region
          _
        $region28: #{cross_attention_layer.1} parent=11 // pred_fallthru
          _
      $region12: #{cross_attention_layer.1} parent=5 // pred_fallthru
        _
      %p204 = scmp.lt.s32.totalorder %s15, 2
      // Predicated region
      $region29: #{cross_attention_layer.1} parent=5 // pred_check
        %p205 = pneg %p204
      $region30: #{cross_attention_layer.1} parent=5 // pred_check_branch
        %207 = sbr.rel (%p205) target = $region32
      $region31: #{cross_attention_layer.1} parent=5 // pred_region
        // Predicated region
        $region33: #{cross_attention_layer.1} parent=31 // pred_check
          %p208 = pneg %p35
        $region34: #{cross_attention_layer.1} parent=31 // pred_check_branch
          %210 = sbr.rel (%p208) target = $region36
        $region35: #{cross_attention_layer.1} parent=31 // pred_region
          %s211 = smul.u32 2, %s15
          %p212 = scmp.lt.s32.totalorder %s211, 3
          %s213 = scalar_select %p212, %s211, 3
          %s214 = smul.addr %s213, 8
          %s215 = scalar_lea.vmem %s0, %s214
          %s216 = smul.u32 2, %s15
        $region36: #{cross_attention_layer.1} parent=31 // pred_fallthru
          _
        // Predicated region
        $region37: #{cross_attention_layer.1} parent=31 // pred_check
          %p217 = pneg %p61
        $region38: #{cross_attention_layer.1} parent=31 // pred_check_branch
          %219 = sbr.rel (%p217) target = $region40
        $region39: #{cross_attention_layer.1} parent=31 // pred_region
          %s220 = smul.u32 2, %s15
          %p221 = scmp.lt.s32.totalorder %s220, 3
          %s222 = scalar_select %p221, %s220, 3
          %s223 = smul.addr %s222, 2
          %s224 = smul.addr %s223, 8
          %s225 = scalar_lea.vmem %s1, %s224
          %s226 = smul.u32 2, %s15
        $region40: #{cross_attention_layer.1} parent=31 // pred_fallthru
          _
      $region32: #{cross_attention_layer.1} parent=5 // pred_fallthru
        _
      %p227 = scmp.le.s32.totalorder 1, %s15
      %p228 = scmp.lt.s32.totalorder %s15, 3
      %p229 = pnand %p227, %p228
      %p230 = pneg %p229
      // Predicated region
      $region41: #{cross_attention_layer.1} parent=5 // pred_check
        _
      $region42: #{cross_attention_layer.1} parent=5 // pred_check_branch
        %232 = sbr.rel (%p229) target = $region44
      $region43: #{cross_attention_layer.1} parent=5 // pred_region
        %s233 = ssub.s32 %s15, 1
        %s234 = smul.u32 2, %s20
        %p235 = scmp.lt.s32.totalorder %s234, 3
        %s236 = scalar_select %p235, %s234, 3
        %s237 = smul.addr %s236, 8
        %s238 = scalar_lea.vmem %s0, %s237
        %p239 = pneg %p41
        %p240 = pneg %p38
        %s241 = smul.u32 2, %s20
        %p242 = scmp.lt.s32.totalorder %s241, 3
        %s243 = scalar_select %p242, %s241, 3
        %s244 = smul.addr %s243, 2
        %s245 = smul.addr %s244, 8
        %s246 = scalar_lea.vmem %s1, %s245
        %p247 = pneg %p67
        %p248 = pneg %p64
        %p249 = pneg %p88
        %p250 = pneg %p85
        %p251 = pneg %p109
        %p252 = pneg %p106
        %p253 = pneg %p130
        %p254 = pneg %p127
        %p255 = pneg %p151
        %p256 = pneg %p148
        %p257 = pneg %p177
        %p258 = pneg %p174
        %s259 = sand.u32 %s164, 1
        %s260 = scalar_lea.sflag [#allocation5], %s259
        %s261 = sand.u32 %s164, 1
        %s262 = smul.addr %s261, 16
        %s263 = scalar_lea.vmem [#allocation4], %s262
        %s264 = smul.u32 2, %s20
        %p265 = scmp.lt.s32.totalorder %s264, 3
        %s266 = scalar_select %p265, %s264, 3
        %s267 = smul.addr %s266, 8
        %s268 = scalar_lea.vmem %s0, %s267
        %s269 = smul.u32 2, %s20
        %s270 = smul.u32 2, %s20
        %p271 = scmp.lt.s32.totalorder %s270, 3
        %s272 = scalar_select %p271, %s270, 3
        %s273 = smul.addr %s272, 2
        %s274 = smul.addr %s273, 8
        %s275 = scalar_lea.vmem %s1, %s274
        %s276 = smul.u32 2, %s20
        %s277 = smul.u32 2, %s20
        %v278 = vld [vmem:[%s268] sm:$0xff]
        %v279 = vld [vmem:[%s268 + $0x8] sm:$0xff]
        %v280 = vld [vmem:[%s275] sm:$0xff]
        %v281 = vld [vmem:[%s275 + $0x8] sm:$0xff]
        %v282 = vld [vmem:[%s275 + $0x10] sm:$0xff]
        %v283 = vld [vmem:[%s275 + $0x18] sm:$0xff]
        %v284 = vld [vmem:[%s2] sm:$0xff]
        %v285 = vld [vmem:[%s2 + $0x8] sm:$0xff]
        %v286 = vld [vmem:[%s2 + $0x10] sm:$0xff]
        %v287 = vld [vmem:[%s2 + $0x18] sm:$0xff]
        %v288 = vld [vmem:[%s3] sm:$0x1]
        %v290 = vlaneseq
        %v291 = vshrl.u32 %v290, 7
        %v292 = vsub.s32 0, %v291
        %v293 = vrot.slane %v288, %v292
        %vm295 = vcmask 261120
        %v297 = vsel %vm295, %v278, 0
        %v300 = vsel %vm295, %v279, 0
        %302 = vmatprep.subr.mxu0 0.0
        %303 = vmatpush1.msra.mxu0 %v284
        %304 = vmatprep.subr.mxu0 0.0
        %305 = vmatpush1.msra.mxu0 %v285
        %306 = vmatprep.subr.mxu0 0.0
        %307 = vmatpush1.msra.mxu0 %v286
        %308 = vmatprep.subr.mxu0 0.0
        %309 = vmatpush1.msra.mxu0 %v287
        %310 = vmatprep.subr.mxu0 0.0
        %311 = vmatpush1.msra.mxu0 0.0
        %312 = vmatprep.subr.mxu0 0.0
        %313 = vmatpush1.msra.mxu0 0.0
        %314 = vmatprep.subr.mxu0 0.0
        %315 = vmatpush1.msra.mxu0 0.0
        %316 = vmatprep.subr.mxu0 0.0
        %317 = vmatpush1.msra.mxu0 0.0
        %318 = vmatprep.subr.mxu0 0.0
        %319 = vmatpush1.msra.mxu0 0.0
        %320 = vmatprep.subr.mxu0 0.0
        %321 = vmatpush1.msra.mxu0 0.0
        %322 = vmatprep.subr.mxu0 0.0
        %323 = vmatpush1.msra.mxu0 0.0
        %324 = vmatprep.subr.mxu0 0.0
        %325 = vmatpush1.msra.mxu0 0.0
        %326 = vmatprep.subr.mxu0 0.0
        %327 = vmatpush1.msra.mxu0 0.0
        %328 = vmatprep.subr.mxu0 0.0
        %329 = vmatpush1.msra.mxu0 0.0
        %330 = vmatprep.subr.mxu0 0.0
        %331 = vmatpush1.msra.mxu0 0.0
        %332 = vmatprep.subr.mxu0 0.0
        %333 = vmatpush1.msra.mxu0 0.0
        %334 = vmatprep.subr.mxu0 0.0
        %335 = vmatpush1.msra.mxu0 0.0
        %336 = vmatprep.subr.mxu0 0.0
        %337 = vmatpush1.msra.mxu0 0.0
        %338 = vmatprep.subr.mxu0 0.0
        %339 = vmatpush1.msra.mxu0 0.0
        %340 = vmatprep.subr.mxu0 0.0
        %341 = vmatpush1.msra.mxu0 0.0
        %342 = vmatprep.subr.mxu0 0.0
        %343 = vmatpush1.msra.mxu0 0.0
        %344 = vmatprep.subr.mxu0 0.0
        %345 = vmatpush1.msra.mxu0 0.0
        %346 = vmatprep.subr.mxu0 0.0
        %347 = vmatpush1.msra.mxu0 0.0
        %348 = vmatprep.subr.mxu0 0.0
        %349 = vmatpush1.msra.mxu0 0.0
        %350 = vmatprep.subr.mxu0 0.0
        %351 = vmatpush1.msra.mxu0 0.0
        %352 = vmatprep.subr.mxu0 0.0
        %353 = vmatpush1.msra.mxu0 0.0
        %354 = vmatprep.subr.mxu0 0.0
        %355 = vmatpush1.msra.mxu0 0.0
        %356 = vmatprep.subr.mxu0 0.0
        %357 = vmatpush1.msra.mxu0 0.0
        %358 = vmatprep.subr.mxu0 0.0
        %359 = vmatpush1.msra.mxu0 0.0
        %360 = vmatprep.subr.mxu0 0.0
        %361 = vmatpush1.msra.mxu0 0.0
        %362 = vmatprep.subr.mxu0 0.0
        %363 = vmatpush1.msra.mxu0 0.0
        %364 = vmatprep.subr.mxu0 0.0
        %365 = vmatpush1.msra.mxu0 0.0
        %366 = vmatprep.mubr.f32.mxu0 0.0
        %367 = vmatmul.mubr.f32.gmra.mrb[0].mxu0 %v297
        %v368 = vpop.f32.mrb[0].mxu0
        %v369 = vadd.f32 %v293, %v368
        %v370 = vpop.f32.mrb[0].mxu0
        %371 = vmatprep.mubr.f32.mxu0 0.0
        %372 = vmatmul.mubr.f32.gmra.mrb[0].mxu0 %v300
        %v373 = vpop.f32.mrb[0].mxu0
        %v374 = vadd.f32 %v293, %v373
        %v375 = vpop.f32.mrb[0].mxu0
        %376 = vdwg.mxu0
        %v377 = vld [vmem:[%s4] sm:$0xff]
        %v378 = vld [vmem:[%s4 + $0x8] sm:$0xff]
        %v379 = vld [vmem:[%s4 + $0x10] sm:$0xff]
        %v380 = vld [vmem:[%s4 + $0x18] sm:$0xff]
        %v381 = vld [vmem:[%s5] sm:$0x1]
        %v383 = vlaneseq
        %v384 = vshrl.u32 %v383, 7
        %v385 = vsub.s32 0, %v384
        %v386 = vrot.slane %v381, %v385
        %v389 = vsel %vm295, %v280, 0
        %v392 = vsel %vm295, %v281, 0
        %v395 = vsel %vm295, %v282, 0
        %v398 = vsel %vm295, %v283, 0
        %400 = vmatprep.subr.mxu0 0.0
        %401 = vmatpush1.msra.mxu0 %v377
        %402 = vmatprep.subr.mxu0 0.0
        %403 = vmatpush1.msra.mxu0 %v378
        %404 = vmatprep.subr.mxu0 0.0
        %405 = vmatpush1.msra.mxu0 %v379
        %406 = vmatprep.subr.mxu0 0.0
        %407 = vmatpush1.msra.mxu0 %v380
        %408 = vmatprep.subr.mxu0 0.0
        %409 = vmatpush1.msra.mxu0 0.0
        %410 = vmatprep.subr.mxu0 0.0
        %411 = vmatpush1.msra.mxu0 0.0
        %412 = vmatprep.subr.mxu0 0.0
        %413 = vmatpush1.msra.mxu0 0.0
        %414 = vmatprep.subr.mxu0 0.0
        %415 = vmatpush1.msra.mxu0 0.0
        %416 = vmatprep.subr.mxu0 0.0
        %417 = vmatpush1.msra.mxu0 0.0
        %418 = vmatprep.subr.mxu0 0.0
        %419 = vmatpush1.msra.mxu0 0.0
        %420 = vmatprep.subr.mxu0 0.0
        %421 = vmatpush1.msra.mxu0 0.0
        %422 = vmatprep.subr.mxu0 0.0
        %423 = vmatpush1.msra.mxu0 0.0
        %424 = vmatprep.subr.mxu0 0.0
        %425 = vmatpush1.msra.mxu0 0.0
        %426 = vmatprep.subr.mxu0 0.0
        %427 = vmatpush1.msra.mxu0 0.0
        %428 = vmatprep.subr.mxu0 0.0
        %429 = vmatpush1.msra.mxu0 0.0
        %430 = vmatprep.subr.mxu0 0.0
        %431 = vmatpush1.msra.mxu0 0.0
        %432 = vmatprep.subr.mxu0 0.0
        %433 = vmatpush1.msra.mxu0 0.0
        %434 = vmatprep.subr.mxu0 0.0
        %435 = vmatpush1.msra.mxu0 0.0
        %436 = vmatprep.subr.mxu0 0.0
        %437 = vmatpush1.msra.mxu0 0.0
        %438 = vmatprep.subr.mxu0 0.0
        %439 = vmatpush1.msra.mxu0 0.0
        %440 = vmatprep.subr.mxu0 0.0
        %441 = vmatpush1.msra.mxu0 0.0
        %442 = vmatprep.subr.mxu0 0.0
        %443 = vmatpush1.msra.mxu0 0.0
        %444 = vmatprep.subr.mxu0 0.0
        %445 = vmatpush1.msra.mxu0 0.0
        %446 = vmatprep.subr.mxu0 0.0
        %447 = vmatpush1.msra.mxu0 0.0
        %448 = vmatprep.subr.mxu0 0.0
        %449 = vmatpush1.msra.mxu0 0.0
        %450 = vmatprep.subr.mxu0 0.0
        %451 = vmatpush1.msra.mxu0 0.0
        %452 = vmatprep.subr.mxu0 0.0
        %453 = vmatpush1.msra.mxu0 0.0
        %454 = vmatprep.subr.mxu0 0.0
        %455 = vmatpush1.msra.mxu0 0.0
        %456 = vmatprep.subr.mxu0 0.0
        %457 = vmatpush1.msra.mxu0 0.0
        %458 = vmatprep.subr.mxu0 0.0
        %459 = vmatpush1.msra.mxu0 0.0
        %460 = vmatprep.subr.mxu0 0.0
        %461 = vmatpush1.msra.mxu0 0.0
        %462 = vmatprep.subr.mxu0 0.0
        %463 = vmatpush1.msra.mxu0 0.0
        %464 = vmatprep.mubr.f32.mxu0 0.0
        %465 = vmatmul.mubr.f32.gmra.mrb[0].mxu0 %v389
        %v466 = vpop.f32.mrb[0].mxu0
        %v467 = vadd.f32 %v386, %v466
        %v468 = vpop.f32.mrb[0].mxu0
        %469 = vmatprep.mubr.f32.mxu0 0.0
        %470 = vmatmul.mubr.f32.gmra.mrb[0].mxu0 %v392
        %v471 = vpop.f32.mrb[0].mxu0
        %v472 = vadd.f32 %v386, %v471
        %v473 = vpop.f32.mrb[0].mxu0
        %474 = vmatprep.mubr.f32.mxu0 0.0
        %475 = vmatmul.mubr.f32.gmra.mrb[0].mxu0 %v395
        %v476 = vpop.f32.mrb[0].mxu0
        %v477 = vadd.f32 %v386, %v476
        %v478 = vpop.f32.mrb[0].mxu0
        %479 = vmatprep.mubr.f32.mxu0 0.0
        %480 = vmatmul.mubr.f32.gmra.mrb[0].mxu0 %v398
        %v481 = vpop.f32.mrb[0].mxu0
        %v482 = vadd.f32 %v386, %v481
        %v483 = vpop.f32.mrb[0].mxu0
        %484 = vdwg.mxu0
        %485 = vst.msk [vmem:[#allocation2] sm:$0xff] %vm295, %v369
        %486 = vst.msk [vmem:[#allocation2 + $0x8] sm:$0xff] %vm295, %v374
        %vm487 = vcmask 523264
        %488 = vst.msk [vmem:[#allocation3] sm:$0xff] %vm487, %v467
        %489 = vst.msk [vmem:[#allocation3 + $0x8] sm:$0xff] %vm487, %v472
        %490 = vst.msk [vmem:[#allocation3 + $0x10] sm:$0xff] %vm487, %v477
        %491 = vst.msk [vmem:[#allocation3 + $0x18] sm:$0xff] %vm487, %v482
        loop: start=0, step=1, limit=2
        $region45: #{cross_attention_layer.1} parent=43 // loop_pre_header
          _
        $region46: #{cross_attention_layer.1} parent=43 // loop_header
          %s493 = sphi 0, %s497
          %p494 = scmp.ge.s32.totalorder %s493, 2
        $region47: #{cross_attention_layer.1} parent=43 // loop_header_branch
          %496 = sbr.rel (%p494) target = $region51
        $region48: #{cross_attention_layer.1} parent=43 // loop_body
          %s498 = smul.u32 %s493, 8
          %s499 = smul.u32 %s493, 16
          %s500 = scalar_lea.vmem [#allocation2], %s498
          %v501 = vld [vmem:[%s500] sm:$0xff]
          %s502 = scalar_lea.vmem [#allocation3], %s499
          %v503 = vld [vmem:[%s502] sm:$0xff]
          %v504 = vld [vmem:[%s502 + $0x8] sm:$0xff]
          %vm505 = vcmask 64512
          %v507 = vsel %vm505, %v501, 0
          %v510 = vsel %vm505, %v503, 0
          %v513 = vsel %vm505, %v504, 0
          %515 = vmatprep.subr.mxu0 0.0
          %516 = vmatpush1.xpose.msra.mxu0 %v510
          %517 = vmatprep.subr.mxu0 0.0
          %518 = vmatpush1.xpose.msra.mxu0 %v513
          %519 = vmatprep.subr.mxu0 0.0
          %520 = vmatpush1.xpose.msra.mxu0 0.0
          %521 = vmatprep.subr.mxu0 0.0
          %522 = vmatpush1.xpose.msra.mxu0 0.0
          %523 = vmatprep.subr.mxu0 0.0
          %524 = vmatpush1.xpose.msra.mxu0 0.0
          %525 = vmatprep.subr.mxu0 0.0
          %526 = vmatpush1.xpose.msra.mxu0 0.0
          %527 = vmatprep.subr.mxu0 0.0
          %528 = vmatpush1.xpose.msra.mxu0 0.0
          %529 = vmatprep.subr.mxu0 0.0
          %530 = vmatpush1.xpose.msra.mxu0 0.0
          %531 = vmatprep.subr.mxu0 0.0
          %532 = vmatpush1.xpose.msra.mxu0 0.0
          %533 = vmatprep.subr.mxu0 0.0
          %534 = vmatpush1.xpose.msra.mxu0 0.0
          %535 = vmatprep.subr.mxu0 0.0
          %536 = vmatpush1.xpose.msra.mxu0 0.0
          %537 = vmatprep.subr.mxu0 0.0
          %538 = vmatpush1.xpose.msra.mxu0 0.0
          %539 = vmatprep.subr.mxu0 0.0
          %540 = vmatpush1.xpose.msra.mxu0 0.0
          %541 = vmatprep.subr.mxu0 0.0
          %542 = vmatpush1.xpose.msra.mxu0 0.0
          %543 = vmatprep.subr.mxu0 0.0
          %544 = vmatpush1.xpose.msra.mxu0 0.0
          %545 = vmatprep.subr.mxu0 0.0
          %546 = vmatpush1.xpose.msra.mxu0 0.0
          %547 = vmatprep.subr.mxu0 0.0
          %548 = vmatpush1.xpose.msra.mxu0 0.0
          %549 = vmatprep.subr.mxu0 0.0
          %550 = vmatpush1.xpose.msra.mxu0 0.0
          %551 = vmatprep.subr.mxu0 0.0
          %552 = vmatpush1.xpose.msra.mxu0 0.0
          %553 = vmatprep.subr.mxu0 0.0
          %554 = vmatpush1.xpose.msra.mxu0 0.0
          %555 = vmatprep.subr.mxu0 0.0
          %556 = vmatpush1.xpose.msra.mxu0 0.0
          %557 = vmatprep.subr.mxu0 0.0
          %558 = vmatpush1.xpose.msra.mxu0 0.0
          %559 = vmatprep.subr.mxu0 0.0
          %560 = vmatpush1.xpose.msra.mxu0 0.0
          %561 = vmatprep.subr.mxu0 0.0
          %562 = vmatpush1.xpose.msra.mxu0 0.0
          %563 = vmatprep.subr.mxu0 0.0
          %564 = vmatpush1.xpose.msra.mxu0 0.0
          %565 = vmatprep.subr.mxu0 0.0
          %566 = vmatpush1.xpose.msra.mxu0 0.0
          %567 = vmatprep.subr.mxu0 0.0
          %568 = vmatpush1.xpose.msra.mxu0 0.0
          %569 = vmatprep.subr.mxu0 0.0
          %570 = vmatpush1.xpose.msra.mxu0 0.0
          %571 = vmatprep.subr.mxu0 0.0
          %572 = vmatpush1.xpose.msra.mxu0 0.0
          %573 = vmatprep.subr.mxu0 0.0
          %574 = vmatpush1.xpose.msra.mxu0 0.0
          %575 = vmatprep.subr.mxu0 0.0
          %576 = vmatpush1.xpose.msra.mxu0 0.0
          %577 = vmatprep.subr.mxu0 0.0
          %578 = vmatpush1.xpose.msra.mxu0 0.0
          %579 = vmatprep.mubr.f32.mxu0 0.0
          %580 = vmatmul.mubr.f32.gmra.mrb[0].mxu0 %v507
          %v581 = vpop.f32.mrb[0].mxu0
          %v582 = vadd.f32 0.0, %v581
          %v583 = vpop.f32.mrb[0].mxu0
          %584 = vdwg.mxu0
          %vm585 = vcmask 130048
          %v586 = vsel %vm585, %v582, -inf
          %587 = vmax.xlane.f32.xlu0 %v586
          %v588 = vpop.xlane.xlu0 %587
          %v589 = vsub.f32 %v582, %v588
          %v590 = vmul.f32 %v589, 1.442695
          %v591 = vpow.pop %v590
          %v592 = vsel %vm585, %v591, 0.0
          %593 = vadd.xlane.f32.xlu0 %v592
          %v594 = vpop.xlane.xlu0 %593
          %v595 = vrcp.pop %v594
          %v596 = vmul.f32 %v591, %v595
          %597 = vrot.lane.b32.xlu0 %v503, 96
          %v598 = vpop.permute.xlu0 %597
          %599 = vrot.lane.b32.xlu0 %v504, 96
          %v600 = vpop.permute.xlu0 %599
          %v604 = vsel %vm585, %v596, 0
          %606 = vmatprep.subr.mxu0 0.0
          %607 = vmatpush1.msra.mxu0 %v598
          %608 = vmatprep.subr.mxu0 0.0
          %609 = vmatpush1.msra.mxu0 %v600
          %610 = vmatprep.subr.mxu0 0.0
          %611 = vmatpush1.msra.mxu0 0.0
          %612 = vmatprep.subr.mxu0 0.0
          %613 = vmatpush1.msra.mxu0 0.0
          %614 = vmatprep.subr.mxu0 0.0
          %615 = vmatpush1.msra.mxu0 0.0
          %616 = vmatprep.subr.mxu0 0.0
          %617 = vmatpush1.msra.mxu0 0.0
          %618 = vmatprep.subr.mxu0 0.0
          %619 = vmatpush1.msra.mxu0 0.0
          %620 = vmatprep.subr.mxu0 0.0
          %621 = vmatpush1.msra.mxu0 0.0
          %622 = vmatprep.subr.mxu0 0.0
          %623 = vmatpush1.msra.mxu0 0.0
          %624 = vmatprep.subr.mxu0 0.0
          %625 = vmatpush1.msra.mxu0 0.0
          %626 = vmatprep.subr.mxu0 0.0
          %627 = vmatpush1.msra.mxu0 0.0
          %628 = vmatprep.subr.mxu0 0.0
          %629 = vmatpush1.msra.mxu0 0.0
          %630 = vmatprep.subr.mxu0 0.0
          %631 = vmatpush1.msra.mxu0 0.0
          %632 = vmatprep.subr.mxu0 0.0
          %633 = vmatpush1.msra.mxu0 0.0
          %634 = vmatprep.subr.mxu0 0.0
          %635 = vmatpush1.msra.mxu0 0.0
          %636 = vmatprep.subr.mxu0 0.0
          %637 = vmatpush1.msra.mxu0 0.0
          %638 = vmatprep.subr.mxu0 0.0
          %639 = vmatpush1.msra.mxu0 0.0
          %640 = vmatprep.subr.mxu0 0.0
          %641 = vmatpush1.msra.mxu0 0.0
          %642 = vmatprep.subr.mxu0 0.0
          %643 = vmatpush1.msra.mxu0 0.0
          %644 = vmatprep.subr.mxu0 0.0
          %645 = vmatpush1.msra.mxu0 0.0
          %646 = vmatprep.subr.mxu0 0.0
          %647 = vmatpush1.msra.mxu0 0.0
          %648 = vmatprep.subr.mxu0 0.0
          %649 = vmatpush1.msra.mxu0 0.0
          %650 = vmatprep.subr.mxu0 0.0
          %651 = vmatpush1.msra.mxu0 0.0
          %652 = vmatprep.subr.mxu0 0.0
          %653 = vmatpush1.msra.mxu0 0.0
          %654 = vmatprep.subr.mxu0 0.0
          %655 = vmatpush1.msra.mxu0 0.0
          %656 = vmatprep.subr.mxu0 0.0
          %657 = vmatpush1.msra.mxu0 0.0
          %658 = vmatprep.subr.mxu0 0.0
          %659 = vmatpush1.msra.mxu0 0.0
          %660 = vmatprep.subr.mxu0 0.0
          %661 = vmatpush1.msra.mxu0 0.0
          %662 = vmatprep.subr.mxu0 0.0
          %663 = vmatpush1.msra.mxu0 0.0
          %664 = vmatprep.subr.mxu0 0.0
          %665 = vmatpush1.msra.mxu0 0.0
          %666 = vmatprep.subr.mxu0 0.0
          %667 = vmatpush1.msra.mxu0 0.0
          %668 = vmatprep.subr.mxu0 0.0
          %669 = vmatpush1.msra.mxu0 0.0
          %670 = vmatprep.mubr.f32.mxu0 0.0
          %671 = vmatmul.mubr.f32.gmra.mrb[0].mxu0 %v604
          %v672 = vpop.f32.mrb[0].mxu0
          %v673 = vadd.f32 0.0, %v672
          %v674 = vpop.f32.mrb[0].mxu0
          %675 = vdwg.mxu0
          %676 = vrot.lane.b32.xlu0 %v501, 120
          %v677 = vpop.permute.xlu0 %676
          %678 = vrot.lane.b32.xlu0 %v503, 120
          %v679 = vpop.permute.xlu0 %678
          %680 = vrot.lane.b32.xlu0 %v504, 120
          %v681 = vpop.permute.xlu0 %680
          %v682 = vsel %vm505, %v677, 0
          %v684 = vsel %vm505, %v679, 0
          %v686 = vsel %vm505, %v681, 0
          %688 = vmatprep.subr.mxu0 0.0
          %689 = vmatpush1.xpose.msra.mxu0 %v684
          %690 = vmatprep.subr.mxu0 0.0
          %691 = vmatpush1.xpose.msra.mxu0 %v686
          %692 = vmatprep.subr.mxu0 0.0
          %693 = vmatpush1.xpose.msra.mxu0 0.0
          %694 = vmatprep.subr.mxu0 0.0
          %695 = vmatpush1.xpose.msra.mxu0 0.0
          %696 = vmatprep.subr.mxu0 0.0
          %697 = vmatpush1.xpose.msra.mxu0 0.0
          %698 = vmatprep.subr.mxu0 0.0
          %699 = vmatpush1.xpose.msra.mxu0 0.0
          %700 = vmatprep.subr.mxu0 0.0
          %701 = vmatpush1.xpose.msra.mxu0 0.0
          %702 = vmatprep.subr.mxu0 0.0
          %703 = vmatpush1.xpose.msra.mxu0 0.0
          %704 = vmatprep.subr.mxu0 0.0
          %705 = vmatpush1.xpose.msra.mxu0 0.0
          %706 = vmatprep.subr.mxu0 0.0
          %707 = vmatpush1.xpose.msra.mxu0 0.0
          %708 = vmatprep.subr.mxu0 0.0
          %709 = vmatpush1.xpose.msra.mxu0 0.0
          %710 = vmatprep.subr.mxu0 0.0
          %711 = vmatpush1.xpose.msra.mxu0 0.0
          %712 = vmatprep.subr.mxu0 0.0
          %713 = vmatpush1.xpose.msra.mxu0 0.0
          %714 = vmatprep.subr.mxu0 0.0
          %715 = vmatpush1.xpose.msra.mxu0 0.0
          %716 = vmatprep.subr.mxu0 0.0
          %717 = vmatpush1.xpose.msra.mxu0 0.0
          %718 = vmatprep.subr.mxu0 0.0
          %719 = vmatpush1.xpose.msra.mxu0 0.0
          %720 = vmatprep.subr.mxu0 0.0
          %721 = vmatpush1.xpose.msra.mxu0 0.0
          %722 = vmatprep.subr.mxu0 0.0
          %723 = vmatpush1.xpose.msra.mxu0 0.0
          %724 = vmatprep.subr.mxu0 0.0
          %725 = vmatpush1.xpose.msra.mxu0 0.0
          %726 = vmatprep.subr.mxu0 0.0
          %727 = vmatpush1.xpose.msra.mxu0 0.0
          %728 = vmatprep.subr.mxu0 0.0
          %729 = vmatpush1.xpose.msra.mxu0 0.0
          %730 = vmatprep.subr.mxu0 0.0
          %731 = vmatpush1.xpose.msra.mxu0 0.0
          %732 = vmatprep.subr.mxu0 0.0
          %733 = vmatpush1.xpose.msra.mxu0 0.0
          %734 = vmatprep.subr.mxu0 0.0
          %735 = vmatpush1.xpose.msra.mxu0 0.0
          %736 = vmatprep.subr.mxu0 0.0
          %737 = vmatpush1.xpose.msra.mxu0 0.0
          %738 = vmatprep.subr.mxu0 0.0
          %739 = vmatpush1.xpose.msra.mxu0 0.0
          %740 = vmatprep.subr.mxu0 0.0
          %741 = vmatpush1.xpose.msra.mxu0 0.0
          %742 = vmatprep.subr.mxu0 0.0
          %743 = vmatpush1.xpose.msra.mxu0 0.0
          %744 = vmatprep.subr.mxu0 0.0
          %745 = vmatpush1.xpose.msra.mxu0 0.0
          %746 = vmatprep.subr.mxu0 0.0
          %747 = vmatpush1.xpose.msra.mxu0 0.0
          %748 = vmatprep.subr.mxu0 0.0
          %749 = vmatpush1.xpose.msra.mxu0 0.0
          %750 = vmatprep.subr.mxu0 0.0
          %751 = vmatpush1.xpose.msra.mxu0 0.0
          %752 = vmatprep.mubr.f32.mxu0 0.0
          %753 = vmatmul.mubr.f32.gmra.mrb[0].mxu0 %v682
          %v754 = vpop.f32.mrb[0].mxu0
          %v755 = vadd.f32 0.0, %v754
          %v756 = vpop.f32.mrb[0].mxu0
          %757 = vdwg.mxu0
          %v758 = vsel %vm585, %v755, -inf
          %759 = vmax.xlane.f32.xlu0 %v758
          %v760 = vpop.xlane.xlu0 %759
          %v761 = vsub.f32 %v755, %v760
          %v762 = vmul.f32 %v761, 1.442695
          %v763 = vpow.pop %v762
          %v764 = vsel %vm585, %v763, 0.0
          %765 = vadd.xlane.f32.xlu0 %v764
          %v766 = vpop.xlane.xlu0 %765
          %v767 = vrcp.pop %v766
          %v768 = vmul.f32 %v763, %v767
          %769 = vrot.lane.b32.xlu0 %v503, 88
          %v770 = vpop.permute.xlu0 %769
          %771 = vrot.lane.b32.xlu0 %v504, 88
          %v772 = vpop.permute.xlu0 %771
          %v776 = vsel %vm585, %v768, 0
          %778 = vmatprep.subr.mxu0 0.0
          %779 = vmatpush1.msra.mxu0 %v770
          %780 = vmatprep.subr.mxu0 0.0
          %781 = vmatpush1.msra.mxu0 %v772
          %782 = vmatprep.subr.mxu0 0.0
          %783 = vmatpush1.msra.mxu0 0.0
          %784 = vmatprep.subr.mxu0 0.0
          %785 = vmatpush1.msra.mxu0 0.0
          %786 = vmatprep.subr.mxu0 0.0
          %787 = vmatpush1.msra.mxu0 0.0
          %788 = vmatprep.subr.mxu0 0.0
          %789 = vmatpush1.msra.mxu0 0.0
          %790 = vmatprep.subr.mxu0 0.0
          %791 = vmatpush1.msra.mxu0 0.0
          %792 = vmatprep.subr.mxu0 0.0
          %793 = vmatpush1.msra.mxu0 0.0
          %794 = vmatprep.subr.mxu0 0.0
          %795 = vmatpush1.msra.mxu0 0.0
          %796 = vmatprep.subr.mxu0 0.0
          %797 = vmatpush1.msra.mxu0 0.0
          %798 = vmatprep.subr.mxu0 0.0
          %799 = vmatpush1.msra.mxu0 0.0
          %800 = vmatprep.subr.mxu0 0.0
          %801 = vmatpush1.msra.mxu0 0.0
          %802 = vmatprep.subr.mxu0 0.0
          %803 = vmatpush1.msra.mxu0 0.0
          %804 = vmatprep.subr.mxu0 0.0
          %805 = vmatpush1.msra.mxu0 0.0
          %806 = vmatprep.subr.mxu0 0.0
          %807 = vmatpush1.msra.mxu0 0.0
          %808 = vmatprep.subr.mxu0 0.0
          %809 = vmatpush1.msra.mxu0 0.0
          %810 = vmatprep.subr.mxu0 0.0
          %811 = vmatpush1.msra.mxu0 0.0
          %812 = vmatprep.subr.mxu0 0.0
          %813 = vmatpush1.msra.mxu0 0.0
          %814 = vmatprep.subr.mxu0 0.0
          %815 = vmatpush1.msra.mxu0 0.0
          %816 = vmatprep.subr.mxu0 0.0
          %817 = vmatpush1.msra.mxu0 0.0
          %818 = vmatprep.subr.mxu0 0.0
          %819 = vmatpush1.msra.mxu0 0.0
          %820 = vmatprep.subr.mxu0 0.0
          %821 = vmatpush1.msra.mxu0 0.0
          %822 = vmatprep.subr.mxu0 0.0
          %823 = vmatpush1.msra.mxu0 0.0
          %824 = vmatprep.subr.mxu0 0.0
          %825 = vmatpush1.msra.mxu0 0.0
          %826 = vmatprep.subr.mxu0 0.0
          %827 = vmatpush1.msra.mxu0 0.0
          %828 = vmatprep.subr.mxu0 0.0
          %829 = vmatpush1.msra.mxu0 0.0
          %830 = vmatprep.subr.mxu0 0.0
          %831 = vmatpush1.msra.mxu0 0.0
          %832 = vmatprep.subr.mxu0 0.0
          %833 = vmatpush1.msra.mxu0 0.0
          %834 = vmatprep.subr.mxu0 0.0
          %835 = vmatpush1.msra.mxu0 0.0
          %836 = vmatprep.subr.mxu0 0.0
          %837 = vmatpush1.msra.mxu0 0.0
          %838 = vmatprep.subr.mxu0 0.0
          %839 = vmatpush1.msra.mxu0 0.0
          %840 = vmatprep.subr.mxu0 0.0
          %841 = vmatpush1.msra.mxu0 0.0
          %842 = vmatprep.mubr.f32.mxu0 0.0
          %843 = vmatmul.mubr.f32.gmra.mrb[0].mxu0 %v776
          %v844 = vpop.f32.mrb[0].mxu0
          %v845 = vadd.f32 0.0, %v844
          %v846 = vpop.f32.mrb[0].mxu0
          %847 = vdwg.mxu0
          %848 = vrot.lane.b32.xlu0 %v501, 112
          %v849 = vpop.permute.xlu0 %848
          %850 = vrot.lane.b32.xlu0 %v503, 112
          %v851 = vpop.permute.xlu0 %850
          %852 = vrot.lane.b32.xlu0 %v504, 112
          %v853 = vpop.permute.xlu0 %852
          %v854 = vsel %vm505, %v849, 0
          %v856 = vsel %vm505, %v851, 0
          %v858 = vsel %vm505, %v853, 0
          %860 = vmatprep.subr.mxu0 0.0
          %861 = vmatpush1.xpose.msra.mxu0 %v856
          %862 = vmatprep.subr.mxu0 0.0
          %863 = vmatpush1.xpose.msra.mxu0 %v858
          %864 = vmatprep.subr.mxu0 0.0
          %865 = vmatpush1.xpose.msra.mxu0 0.0
          %866 = vmatprep.subr.mxu0 0.0
          %867 = vmatpush1.xpose.msra.mxu0 0.0
          %868 = vmatprep.subr.mxu0 0.0
          %869 = vmatpush1.xpose.msra.mxu0 0.0
          %870 = vmatprep.subr.mxu0 0.0
          %871 = vmatpush1.xpose.msra.mxu0 0.0
          %872 = vmatprep.subr.mxu0 0.0
          %873 = vmatpush1.xpose.msra.mxu0 0.0
          %874 = vmatprep.subr.mxu0 0.0
          %875 = vmatpush1.xpose.msra.mxu0 0.0
          %876 = vmatprep.subr.mxu0 0.0
          %877 = vmatpush1.xpose.msra.mxu0 0.0
          %878 = vmatprep.subr.mxu0 0.0
          %879 = vmatpush1.xpose.msra.mxu0 0.0
          %880 = vmatprep.subr.mxu0 0.0
          %881 = vmatpush1.xpose.msra.mxu0 0.0
          %882 = vmatprep.subr.mxu0 0.0
          %883 = vmatpush1.xpose.msra.mxu0 0.0
          %884 = vmatprep.subr.mxu0 0.0
          %885 = vmatpush1.xpose.msra.mxu0 0.0
          %886 = vmatprep.subr.mxu0 0.0
          %887 = vmatpush1.xpose.msra.mxu0 0.0
          %888 = vmatprep.subr.mxu0 0.0
          %889 = vmatpush1.xpose.msra.mxu0 0.0
          %890 = vmatprep.subr.mxu0 0.0
          %891 = vmatpush1.xpose.msra.mxu0 0.0
          %892 = vmatprep.subr.mxu0 0.0
          %893 = vmatpush1.xpose.msra.mxu0 0.0
          %894 = vmatprep.subr.mxu0 0.0
          %895 = vmatpush1.xpose.msra.mxu0 0.0
          %896 = vmatprep.subr.mxu0 0.0
          %897 = vmatpush1.xpose.msra.mxu0 0.0
          %898 = vmatprep.subr.mxu0 0.0
          %899 = vmatpush1.xpose.msra.mxu0 0.0
          %900 = vmatprep.subr.mxu0 0.0
          %901 = vmatpush1.xpose.msra.mxu0 0.0
          %902 = vmatprep.subr.mxu0 0.0
          %903 = vmatpush1.xpose.msra.mxu0 0.0
          %904 = vmatprep.subr.mxu0 0.0
          %905 = vmatpush1.xpose.msra.mxu0 0.0
          %906 = vmatprep.subr.mxu0 0.0
          %907 = vmatpush1.xpose.msra.mxu0 0.0
          %908 = vmatprep.subr.mxu0 0.0
          %909 = vmatpush1.xpose.msra.mxu0 0.0
          %910 = vmatprep.subr.mxu0 0.0
          %911 = vmatpush1.xpose.msra.mxu0 0.0
          %912 = vmatprep.subr.mxu0 0.0
          %913 = vmatpush1.xpose.msra.mxu0 0.0
          %914 = vmatprep.subr.mxu0 0.0
          %915 = vmatpush1.xpose.msra.mxu0 0.0
          %916 = vmatprep.subr.mxu0 0.0
          %917 = vmatpush1.xpose.msra.mxu0 0.0
          %918 = vmatprep.subr.mxu0 0.0
          %919 = vmatpush1.xpose.msra.mxu0 0.0
          %920 = vmatprep.subr.mxu0 0.0
          %921 = vmatpush1.xpose.msra.mxu0 0.0
          %922 = vmatprep.subr.mxu0 0.0
          %923 = vmatpush1.xpose.msra.mxu0 0.0
          %924 = vmatprep.mubr.f32.mxu0 0.0
          %925 = vmatmul.mubr.f32.gmra.mrb[0].mxu0 %v854
          %v926 = vpop.f32.mrb[0].mxu0
          %v927 = vadd.f32 0.0, %v926
          %v928 = vpop.f32.mrb[0].mxu0
          %929 = vdwg.mxu0
          %v930 = vsel %vm585, %v927, -inf
          %931 = vmax.xlane.f32.xlu0 %v930
          %v932 = vpop.xlane.xlu0 %931
          %v933 = vsub.f32 %v927, %v932
          %v934 = vmul.f32 %v933, 1.442695
          %v935 = vpow.pop %v934
          %v936 = vsel %vm585, %v935, 0.0
          %937 = vadd.xlane.f32.xlu0 %v936
          %v938 = vpop.xlane.xlu0 %937
          %v939 = vrcp.pop %v938
          %v940 = vmul.f32 %v935, %v939
          %941 = vrot.lane.b32.xlu0 %v503, 80
          %v942 = vpop.permute.xlu0 %941
          %943 = vrot.lane.b32.xlu0 %v504, 80
          %v944 = vpop.permute.xlu0 %943
          %v948 = vsel %vm585, %v940, 0
          %950 = vmatprep.subr.mxu0 0.0
          %951 = vmatpush1.msra.mxu0 %v942
          %952 = vmatprep.subr.mxu0 0.0
          %953 = vmatpush1.msra.mxu0 %v944
          %954 = vmatprep.subr.mxu0 0.0
          %955 = vmatpush1.msra.mxu0 0.0
          %956 = vmatprep.subr.mxu0 0.0
          %957 = vmatpush1.msra.mxu0 0.0
          %958 = vmatprep.subr.mxu0 0.0
          %959 = vmatpush1.msra.mxu0 0.0
          %960 = vmatprep.subr.mxu0 0.0
          %961 = vmatpush1.msra.mxu0 0.0
          %962 = vmatprep.subr.mxu0 0.0
          %963 = vmatpush1.msra.mxu0 0.0
          %964 = vmatprep.subr.mxu0 0.0
          %965 = vmatpush1.msra.mxu0 0.0
          %966 = vmatprep.subr.mxu0 0.0
          %967 = vmatpush1.msra.mxu0 0.0
          %968 = vmatprep.subr.mxu0 0.0
          %969 = vmatpush1.msra.mxu0 0.0
          %970 = vmatprep.subr.mxu0 0.0
          %971 = vmatpush1.msra.mxu0 0.0
          %972 = vmatprep.subr.mxu0 0.0
          %973 = vmatpush1.msra.mxu0 0.0
          %974 = vmatprep.subr.mxu0 0.0
          %975 = vmatpush1.msra.mxu0 0.0
          %976 = vmatprep.subr.mxu0 0.0
          %977 = vmatpush1.msra.mxu0 0.0
          %978 = vmatprep.subr.mxu0 0.0
          %979 = vmatpush1.msra.mxu0 0.0
          %980 = vmatprep.subr.mxu0 0.0
          %981 = vmatpush1.msra.mxu0 0.0
          %982 = vmatprep.subr.mxu0 0.0
          %983 = vmatpush1.msra.mxu0 0.0
          %984 = vmatprep.subr.mxu0 0.0
          %985 = vmatpush1.msra.mxu0 0.0
          %986 = vmatprep.subr.mxu0 0.0
          %987 = vmatpush1.msra.mxu0 0.0
          %988 = vmatprep.subr.mxu0 0.0
          %989 = vmatpush1.msra.mxu0 0.0
          %990 = vmatprep.subr.mxu0 0.0
          %991 = vmatpush1.msra.mxu0 0.0
          %992 = vmatprep.subr.mxu0 0.0
          %993 = vmatpush1.msra.mxu0 0.0
          %994 = vmatprep.subr.mxu0 0.0
          %995 = vmatpush1.msra.mxu0 0.0
          %996 = vmatprep.subr.mxu0 0.0
          %997 = vmatpush1.msra.mxu0 0.0
          %998 = vmatprep.subr.mxu0 0.0
          %999 = vmatpush1.msra.mxu0 0.0
          %1000 = vmatprep.subr.mxu0 0.0
          %1001 = vmatpush1.msra.mxu0 0.0
          %1002 = vmatprep.subr.mxu0 0.0
          %1003 = vmatpush1.msra.mxu0 0.0
          %1004 = vmatprep.subr.mxu0 0.0
          %1005 = vmatpush1.msra.mxu0 0.0
          %1006 = vmatprep.subr.mxu0 0.0
          %1007 = vmatpush1.msra.mxu0 0.0
          %1008 = vmatprep.subr.mxu0 0.0
          %1009 = vmatpush1.msra.mxu0 0.0
          %1010 = vmatprep.subr.mxu0 0.0
          %1011 = vmatpush1.msra.mxu0 0.0
          %1012 = vmatprep.subr.mxu0 0.0
          %1013 = vmatpush1.msra.mxu0 0.0
          %1014 = vmatprep.mubr.f32.mxu0 0.0
          %1015 = vmatmul.mubr.f32.gmra.mrb[0].mxu0 %v948
          %v1016 = vpop.f32.mrb[0].mxu0
          %v1017 = vadd.f32 0.0, %v1016
          %v1018 = vpop.f32.mrb[0].mxu0
          %1019 = vdwg.mxu0
          %1020 = vrot.lane.b32.xlu0 %v501, 104
          %v1021 = vpop.permute.xlu0 %1020
          %1022 = vrot.lane.b32.xlu0 %v503, 104
          %v1023 = vpop.permute.xlu0 %1022
          %1024 = vrot.lane.b32.xlu0 %v504, 104
          %v1025 = vpop.permute.xlu0 %1024
          %v1026 = vsel %vm505, %v1021, 0
          %v1028 = vsel %vm505, %v1023, 0
          %v1030 = vsel %vm505, %v1025, 0
          %1032 = vmatprep.subr.mxu0 0.0
          %1033 = vmatpush1.xpose.msra.mxu0 %v1028
          %1034 = vmatprep.subr.mxu0 0.0
          %1035 = vmatpush1.xpose.msra.mxu0 %v1030
          %1036 = vmatprep.subr.mxu0 0.0
          %1037 = vmatpush1.xpose.msra.mxu0 0.0
          %1038 = vmatprep.subr.mxu0 0.0
          %1039 = vmatpush1.xpose.msra.mxu0 0.0
          %1040 = vmatprep.subr.mxu0 0.0
          %1041 = vmatpush1.xpose.msra.mxu0 0.0
          %1042 = vmatprep.subr.mxu0 0.0
          %1043 = vmatpush1.xpose.msra.mxu0 0.0
          %1044 = vmatprep.subr.mxu0 0.0
          %1045 = vmatpush1.xpose.msra.mxu0 0.0
          %1046 = vmatprep.subr.mxu0 0.0
          %1047 = vmatpush1.xpose.msra.mxu0 0.0
          %1048 = vmatprep.subr.mxu0 0.0
          %1049 = vmatpush1.xpose.msra.mxu0 0.0
          %1050 = vmatprep.subr.mxu0 0.0
          %1051 = vmatpush1.xpose.msra.mxu0 0.0
          %1052 = vmatprep.subr.mxu0 0.0
          %1053 = vmatpush1.xpose.msra.mxu0 0.0
          %1054 = vmatprep.subr.mxu0 0.0
          %1055 = vmatpush1.xpose.msra.mxu0 0.0
          %1056 = vmatprep.subr.mxu0 0.0
          %1057 = vmatpush1.xpose.msra.mxu0 0.0
          %1058 = vmatprep.subr.mxu0 0.0
          %1059 = vmatpush1.xpose.msra.mxu0 0.0
          %1060 = vmatprep.subr.mxu0 0.0
          %1061 = vmatpush1.xpose.msra.mxu0 0.0
          %1062 = vmatprep.subr.mxu0 0.0
          %1063 = vmatpush1.xpose.msra.mxu0 0.0
          %1064 = vmatprep.subr.mxu0 0.0
          %1065 = vmatpush1.xpose.msra.mxu0 0.0
          %1066 = vmatprep.subr.mxu0 0.0
          %1067 = vmatpush1.xpose.msra.mxu0 0.0
          %1068 = vmatprep.subr.mxu0 0.0
          %1069 = vmatpush1.xpose.msra.mxu0 0.0
          %1070 = vmatprep.subr.mxu0 0.0
          %1071 = vmatpush1.xpose.msra.mxu0 0.0
          %1072 = vmatprep.subr.mxu0 0.0
          %1073 = vmatpush1.xpose.msra.mxu0 0.0
          %1074 = vmatprep.subr.mxu0 0.0
          %1075 = vmatpush1.xpose.msra.mxu0 0.0
          %1076 = vmatprep.subr.mxu0 0.0
          %1077 = vmatpush1.xpose.msra.mxu0 0.0
          %1078 = vmatprep.subr.mxu0 0.0
          %1079 = vmatpush1.xpose.msra.mxu0 0.0
          %1080 = vmatprep.subr.mxu0 0.0
          %1081 = vmatpush1.xpose.msra.mxu0 0.0
          %1082 = vmatprep.subr.mxu0 0.0
          %1083 = vmatpush1.xpose.msra.mxu0 0.0
          %1084 = vmatprep.subr.mxu0 0.0
          %1085 = vmatpush1.xpose.msra.mxu0 0.0
          %1086 = vmatprep.subr.mxu0 0.0
          %1087 = vmatpush1.xpose.msra.mxu0 0.0
          %1088 = vmatprep.subr.mxu0 0.0
          %1089 = vmatpush1.xpose.msra.mxu0 0.0
          %1090 = vmatprep.subr.mxu0 0.0
          %1091 = vmatpush1.xpose.msra.mxu0 0.0
          %1092 = vmatprep.subr.mxu0 0.0
          %1093 = vmatpush1.xpose.msra.mxu0 0.0
          %1094 = vmatprep.subr.mxu0 0.0
          %1095 = vmatpush1.xpose.msra.mxu0 0.0
          %1096 = vmatprep.mubr.f32.mxu0 0.0
          %1097 = vmatmul.mubr.f32.gmra.mrb[0].mxu0 %v1026
          %v1098 = vpop.f32.mrb[0].mxu0
          %v1099 = vadd.f32 0.0, %v1098
          %v1100 = vpop.f32.mrb[0].mxu0
          %1101 = vdwg.mxu0
          %v1102 = vsel %vm585, %v1099, -inf
          %1103 = vmax.xlane.f32.xlu0 %v1102
          %v1104 = vpop.xlane.xlu0 %1103
          %v1105 = vsub.f32 %v1099, %v1104
          %v1106 = vmul.f32 %v1105, 1.442695
          %v1107 = vpow.pop %v1106
          %v1108 = vsel %vm585, %v1107, 0.0
          %1109 = vadd.xlane.f32.xlu0 %v1108
          %v1110 = vpop.xlane.xlu0 %1109
          %v1111 = vrcp.pop %v1110
          %v1112 = vmul.f32 %v1107, %v1111
          %1113 = vrot.lane.b32.xlu0 %v503, 72
          %v1114 = vpop.permute.xlu0 %1113
          %1115 = vrot.lane.b32.xlu0 %v504, 72
          %v1116 = vpop.permute.xlu0 %1115
          %v1120 = vsel %vm585, %v1112, 0
          %1122 = vmatprep.subr.mxu0 0.0
          %1123 = vmatpush1.msra.mxu0 %v1114
          %1124 = vmatprep.subr.mxu0 0.0
          %1125 = vmatpush1.msra.mxu0 %v1116
          %1126 = vmatprep.subr.mxu0 0.0
          %1127 = vmatpush1.msra.mxu0 0.0
          %1128 = vmatprep.subr.mxu0 0.0
          %1129 = vmatpush1.msra.mxu0 0.0
          %1130 = vmatprep.subr.mxu0 0.0
          %1131 = vmatpush1.msra.mxu0 0.0
          %1132 = vmatprep.subr.mxu0 0.0
          %1133 = vmatpush1.msra.mxu0 0.0
          %1134 = vmatprep.subr.mxu0 0.0
          %1135 = vmatpush1.msra.mxu0 0.0
          %1136 = vmatprep.subr.mxu0 0.0
          %1137 = vmatpush1.msra.mxu0 0.0
          %1138 = vmatprep.subr.mxu0 0.0
          %1139 = vmatpush1.msra.mxu0 0.0
          %1140 = vmatprep.subr.mxu0 0.0
          %1141 = vmatpush1.msra.mxu0 0.0
          %1142 = vmatprep.subr.mxu0 0.0
          %1143 = vmatpush1.msra.mxu0 0.0
          %1144 = vmatprep.subr.mxu0 0.0
          %1145 = vmatpush1.msra.mxu0 0.0
          %1146 = vmatprep.subr.mxu0 0.0
          %1147 = vmatpush1.msra.mxu0 0.0
          %1148 = vmatprep.subr.mxu0 0.0
          %1149 = vmatpush1.msra.mxu0 0.0
          %1150 = vmatprep.subr.mxu0 0.0
          %1151 = vmatpush1.msra.mxu0 0.0
          %1152 = vmatprep.subr.mxu0 0.0
          %1153 = vmatpush1.msra.mxu0 0.0
          %1154 = vmatprep.subr.mxu0 0.0
          %1155 = vmatpush1.msra.mxu0 0.0
          %1156 = vmatprep.subr.mxu0 0.0
          %1157 = vmatpush1.msra.mxu0 0.0
          %1158 = vmatprep.subr.mxu0 0.0
          %1159 = vmatpush1.msra.mxu0 0.0
          %1160 = vmatprep.subr.mxu0 0.0
          %1161 = vmatpush1.msra.mxu0 0.0
          %1162 = vmatprep.subr.mxu0 0.0
          %1163 = vmatpush1.msra.mxu0 0.0
          %1164 = vmatprep.subr.mxu0 0.0
          %1165 = vmatpush1.msra.mxu0 0.0
          %1166 = vmatprep.subr.mxu0 0.0
          %1167 = vmatpush1.msra.mxu0 0.0
          %1168 = vmatprep.subr.mxu0 0.0
          %1169 = vmatpush1.msra.mxu0 0.0
          %1170 = vmatprep.subr.mxu0 0.0
          %1171 = vmatpush1.msra.mxu0 0.0
          %1172 = vmatprep.subr.mxu0 0.0
          %1173 = vmatpush1.msra.mxu0 0.0
          %1174 = vmatprep.subr.mxu0 0.0
          %1175 = vmatpush1.msra.mxu0 0.0
          %1176 = vmatprep.subr.mxu0 0.0
          %1177 = vmatpush1.msra.mxu0 0.0
          %1178 = vmatprep.subr.mxu0 0.0
          %1179 = vmatpush1.msra.mxu0 0.0
          %1180 = vmatprep.subr.mxu0 0.0
          %1181 = vmatpush1.msra.mxu0 0.0
          %1182 = vmatprep.subr.mxu0 0.0
          %1183 = vmatpush1.msra.mxu0 0.0
          %1184 = vmatprep.subr.mxu0 0.0
          %1185 = vmatpush1.msra.mxu0 0.0
          %1186 = vmatprep.mubr.f32.mxu0 0.0
          %1187 = vmatmul.mubr.f32.gmra.mrb[0].mxu0 %v1120
          %v1188 = vpop.f32.mrb[0].mxu0
          %v1189 = vadd.f32 0.0, %v1188
          %v1190 = vpop.f32.mrb[0].mxu0
          %1191 = vdwg.mxu0
          %1193 = vrot.lane.b32.xlu0 %v845, 8
          %v1194 = vpop.permute.xlu0 %1193
          %1197 = vrot.lane.b32.xlu0 %v1017, 16
          %v1198 = vpop.permute.xlu0 %1197
          %1201 = vrot.lane.b32.xlu0 %v1189, 24
          %v1202 = vpop.permute.xlu0 %1201
          %v1204 = vsel %vm505, %v673, %v1194
          %v1205 = vsel %vm585, %v1204, %v1198
          %vm1206 = vcmask 195584
          %v1207 = vsel %vm1206, %v1205, %v1202
          %s1208 = scalar_lea.vmem %s263, %s498 [#allocation4]
          %1209 = vst.msk [vmem:[%s1208] sm:$0xff] %vm295, %v1207
        $region49: #{cross_attention_layer.1} parent=43 // loop_footer
          %s497 = sadd.s32 1, %s493
        $region50: #{cross_attention_layer.1} parent=43 // loop_footer_branch
          %492 = sbr.rel target = $region46
        $region51: #{cross_attention_layer.1} parent=43 // loop_exit
          _
        %s1210 = sand.u32 %s164, 1
        %s1211 = scalar_lea.sflag [#allocation5], %s1210
        %s1212 = sand.u32 %s164, 1
        %s1213 = smul.addr %s1212, 16
        %s1214 = scalar_lea.vmem [#allocation4], %s1213
        // Predicated region
        $region52: #{cross_attention_layer.1} parent=43 // pred_check
          %p1215 = pneg %p174
        $region53: #{cross_attention_layer.1} parent=43 // pred_check_branch
          %1217 = sbr.rel (%p1215) target = $region55
        $region54: #{cross_attention_layer.1} parent=43 // pred_region
          %s1218 = smul.u32 2, %s20
          %s1220 = ssub.s32 256, 256
          %1221 = vsyncadd %s1211, %s1220
          %s1222 = smul.addr %s1218, 128
          %s1223 = scalar_lea.hbm %s6, %s1222
          %s1224 = sshll.u32 %s1214, 4
          %s1225 = int_to_ptr.vmem [resolvable:$true] %s1224
          %1230 = dma.vmem_to_hbm [thread:$0]  %s1225, 256, %s1223, %s1211, 128, 128, 8
        $region55: #{cross_attention_layer.1} parent=43 // pred_fallthru
          _
      $region44: #{cross_attention_layer.1} parent=5 // pred_fallthru
        _
      %p1231 = scmp.le.s32.totalorder 2, %s15
      // Predicated region
      $region56: #{cross_attention_layer.1} parent=5 // pred_check
        %p1232 = pneg %p1231
      $region57: #{cross_attention_layer.1} parent=5 // pred_check_branch
        %1234 = sbr.rel (%p1232) target = $region59
      $region58: #{cross_attention_layer.1} parent=5 // pred_region
        %s1235 = ssub.s32 %s15, 2
        // Predicated region
        $region60: #{cross_attention_layer.1} parent=58 // pred_check
          %p1236 = pneg %p180
        $region61: #{cross_attention_layer.1} parent=58 // pred_check_branch
          %1238 = sbr.rel (%p1236) target = $region63
        $region62: #{cross_attention_layer.1} parent=58 // pred_region
          %s1239 = sand.u32 %s165, 1
          %s1240 = scalar_lea.sflag [#allocation5], %s1239
          %s1241 = sand.u32 %s165, 1
          %s1242 = smul.addr %s1241, 16
          %s1243 = scalar_lea.vmem [#allocation4], %s1242
          %1244 = dma.done %s1240, 256
        $region63: #{cross_attention_layer.1} parent=58 // pred_fallthru
          _
      $region59: #{cross_attention_layer.1} parent=5 // pred_fallthru
        _
    $region6: #{cross_attention_layer.1} parent=1 // loop_footer
      %s19 = sadd.s32 1, %s15
    $region7: #{cross_attention_layer.1} parent=1 // loop_footer_branch
      %14 = sbr.rel target = $region3
    $region8: #{cross_attention_layer.1} parent=1 // loop_exit
      _
    %1245 = vsyncpa [#allocation5], 1
    %s1246 = scalar_lea.sflag [#allocation5], 1
    %1247 = vsyncpa %s1246, 1

</llo_original>
